<compile_context>
chip_gen: v7x
topology: tpu7x:2x2x1
jax: 0.10.0
libtpu: 0.0.40
codegen_flags: <defaults>
</compile_context>

<pallas_src>
import math

import numpy as np
import jax
import jax.numpy as jnp
from jax.experimental import pallas as pl
from jax.experimental.pallas import tpu as pltpu


# ----------------------------- in-kernel helpers -----------------------------

def _layer_norm(x, g, b, eps):
    mu = jnp.mean(x, axis=-1, keepdims=True)
    var = jnp.mean(jnp.square(x - mu), axis=-1, keepdims=True)
    return (x - mu) * jax.lax.rsqrt(var + eps) * g + b


def _gelu(x):
    c = math.sqrt(2.0 / math.pi)
    return 0.5 * x * (1.0 + jnp.tanh(c * (x + 0.044715 * x * x * x)))


# Row indices inside the packed per-layer vector tensor ([Lr, 12, H], f32).
(_LN1_G, _LN1_B, _SA_B, _LN2_G, _LN2_B, _CA_BQ, _CA_BK, _CA_BV, _CA_BO,
 _LN3_G, _LN3_B, _FF_B2) = range(12)
_N_VEC = 12


# --------------------------------- the kernel --------------------------------

def decoder_kernel(cls_ref, mem_ref, bias_ref, rmat_ref,
                   lnf_g_ref, lnf_b_ref,
                   vec_ref, sa_w_ref, ca_wq_ref, ca_wkv_ref, ca_wo_ref,
                   ff_w1_ref, ff_b1_ref, ff_w2_ref,
                   out_ref):
    layer = pl.program_id(1)

    # Initialize the carried state with cls_embedding on the first layer.
    @pl.when(layer == 0)
    def _():
        out_ref[...] = cls_ref[...]

    x = out_ref[...]                               # [tb, H] f32 decoder state
    tb, H = x.shape
    L = mem_ref.shape[0] // tb
    eps = 1e-6
    f32, bf16 = jnp.float32, jnp.bfloat16

    vec = vec_ref[...]                             # [12, H] f32 packed vectors
    ln1_g, ln1_b = vec[_LN1_G:_LN1_G + 1], vec[_LN1_B:_LN1_B + 1]
    sa_b = vec[_SA_B:_SA_B + 1]
    ln2_g, ln2_b = vec[_LN2_G:_LN2_G + 1], vec[_LN2_B:_LN2_B + 1]
    ca_bq = vec[_CA_BQ:_CA_BQ + 1]
    ca_bk = vec[_CA_BK:_CA_BK + 1]
    ca_bv = vec[_CA_BV:_CA_BV + 1]
    ca_bo = vec[_CA_BO:_CA_BO + 1]
    ln3_g, ln3_b = vec[_LN3_G:_LN3_G + 1], vec[_LN3_B:_LN3_B + 1]
    ff_b2 = vec[_FF_B2:_FF_B2 + 1]

    # ---------------- self attention (query length == 1) ----------------
    # softmax over a single score == 1 -> the two linears were folded offline.
    xn = _layer_norm(x, ln1_g, ln1_b, eps)
    sa_out = jnp.dot(xn.astype(bf16), sa_w_ref[...],
                     preferred_element_type=f32) + sa_b
    q = sa_out + x                                 # residual

    # ----------------------- context (cross) attention -------------------
    qn = _layer_norm(q, ln2_g, ln2_b, eps)
    # 1/sqrt(d_head) already folded into ca_wq / ca_bq in the wrapper.
    q_proj = (jnp.dot(qn.astype(bf16), ca_wq_ref[...],
                      preferred_element_type=f32) + ca_bq).astype(bf16)   # [tb, H]

    # k and v from one fused [H, 2H] weight; large intermediates kept in bf16.
    mem2 = mem_ref[...]                            # [tb*L, H] bf16
    kv = jnp.dot(mem2, ca_wkv_ref[...], preferred_element_type=f32)       # [tb*L, 2H]
    k3 = (kv[:, :H] + ca_bk).astype(bf16).reshape(tb, L, H)
    v3 = (kv[:, H:] + ca_bv).astype(bf16).reshape(tb, L, H)

    # Lane-dense score path: q*k elementwise over the full lane dim, then one bf16
    # matmul against the block-diagonal 0/1 matrix R replicates each head's score
    # sum over that head's dph lanes -> softmax runs on a fully lane-dense tensor.
    qk = q_proj[:, None, :] * k3                   # [tb, L, H] bf16
    s = jnp.dot(qk.reshape(tb * L, H), rmat_ref[...],
                preferred_element_type=f32).reshape(tb, L, H)             # [tb, L, H]
    s = s + bias_ref[...][:, :, None]              # additive padding-mask bias [tb, L]
    s = s - jnp.max(s, axis=1, keepdims=True)
    p = jnp.exp(s)                                 # f32 softmax statistics
    p = p * pl.reciprocal(jnp.sum(p, axis=1, keepdims=True), approx=True)

    # Weighted sum of values; bf16 multiply, f32 accumulation over L.
    ctx = jnp.sum(p.astype(bf16) * v3, axis=1, dtype=f32)                 # [tb, H]

    ca_out = jnp.dot(ctx.astype(bf16), ca_wo_ref[...],
                     preferred_element_type=f32) + ca_bo
    mid = ca_out + q                               # residual

    # ----------------------- position-wise feed forward ------------------
    mn = _layer_norm(mid, ln3_g, ln3_b, eps)
    inter = _gelu(jnp.dot(mn.astype(bf16), ff_w1_ref[...],
                          preferred_element_type=f32) + ff_b1_ref[...])
    y = (jnp.dot(inter.astype(bf16), ff_w2_ref[...],
                 preferred_element_type=f32) + ff_b2) + mid

    out_ref[...] = y

    # Final LayerNorm of the Decoder after the last layer.
    @pl.when(layer == pl.num_programs(1) - 1)
    def _():
        out_ref[...] = _layer_norm(y, lnf_g_ref[...], lnf_b_ref[...], eps)


# --------------------------------- wrapper -----------------------------------

def decoder_forward(txt_id, cls_embedding, encoder_embedding, padding_idx,
                    params, num_heads, batch_block=None):
    B, H = cls_embedding.shape
    L = txt_id.shape[1] - 1
    num_layers = params["ln1_g"].shape[0]
    nh = num_heads
    dph = H // nh
    # Default: full batch in one block so the per-layer weight stream is DMA'd once
    # (single-token decode is weight-bandwidth-bound; splitting the batch multiplies
    # weight HBM traffic by B//tb and starves the MXU rows).
    tb = B if batch_block is None else batch_block
    assert B % tb == 0, "batch_block must divide the batch"

    f32, bf16 = jnp.float32, jnp.bfloat16

    # ---- glue / offline folding (layout & algebra plumbing, outside the kernel) ----
    # Additive padding-mask bias, lane-dense [B, L] (broadcast over H inside kernel).
    bias = (txt_id[:, 1:] == padding_idx).astype(f32) * jnp.float32(-1e18)
    # Memory bank: flatten to 2-D and store in bf16 (halves DMA / VMEM footprint).
    mem2 = encoder_embedding.astype(bf16).reshape(B * L, H)

    # Fold self-attention (softmax weight == 1 for query length 1): two linears -> one.
    sa_w = jnp.einsum("lij,ljk->lik", params["sa_wv"], params["sa_wo"])
    sa_b = jnp.einsum("lij,ljk->lik", params["sa_bv"], params["sa_wo"]) + params["sa_bo"]
    # Fold the 1/sqrt(d_head) score scale into the query projection.
    scale = 1.0 / math.sqrt(dph)
    ca_wq = params["ca_wq"] * scale
    ca_bq = params["ca_bq"] * scale
    # Fuse the k / v projections into one [H, 2H] weight (single matmul, one DMA).
    ca_wkv = jnp.concatenate([params["ca_wk"], params["ca_wv"]], axis=-1)

    # Block-diagonal 0/1 head matrix R[i, j] = 1 iff lanes i, j are in the same head.
    head_of_lane = np.arange(H) // dph
    rmat = (head_of_lane[:, None] == head_of_lane[None, :]).astype(np.float32)  # [H, H]
    rmat = jnp.asarray(rmat, dtype=bf16)           # 0/1 values exact in bf16

    # Pack the 12 per-layer [1, H] vectors into one [Lr, 12, H] f32 tensor.
    vec_pack = jnp.concatenate(
        [params["ln1_g"], params["ln1_b"], sa_b,
         params["ln2_g"], params["ln2_b"],
         ca_bq, params["ca_bk"], params["ca_bv"], params["ca_bo"],
         params["ln3_g"], params["ln3_b"], params["ff_b2"]],
        axis=1).astype(f32)
    assert vec_pack.shape == (num_layers, _N_VEC, H)

    F = params["ff_w1"].shape[-1]
    per_layer_args = [
        vec_pack,                                   # [Lr, 12, H] f32
        sa_w.astype(bf16),                          # [Lr, H, H]
        ca_wq.astype(bf16),                         # [Lr, H, H]
        ca_wkv.astype(bf16),                        # [Lr, H, 2H]
        params["ca_wo"].astype(bf16),               # [Lr, H, H]
        params["ff_w1"].astype(bf16),               # [Lr, H, F]
        params["ff_b1"].astype(f32),                # [Lr, 1, F]
        params["ff_w2"].astype(bf16),               # [Lr, F, H]
    ]

    # ---- BlockSpecs: grid = (batch_blocks, num_layers) ----
    def rep(shape):                 # same full block every grid step
        n = len(shape)
        return pl.BlockSpec(shape, lambda b, l, n=n: (0,) * n)

    def batched(shape):             # blocked along the leading batch dim
        n = len(shape)
        return pl.BlockSpec(shape, lambda b, l, n=n: (b,) + (0,) * (n - 1))

    def per_layer(trailing_shape):  # stacked over layers, layer dim squeezed
        n = len(trailing_shape)
        return pl.BlockSpec((None,) + tuple(trailing_shape),
                            lambda b, l, n=n: (l,) + (0,) * n)

    in_specs = ([batched((tb, H)),            # cls_embedding
                 batched((tb * L, H)),        # memory bank (flattened, bf16)
                 batched((tb, L)),            # additive padding-mask bias (lane-dense)
                 rep((H, H)),                 # block-diagonal head matrix R (bf16)
                 rep((1, H)),                 # final LN gamma
                 rep((1, H))]                 # final LN beta
                + [per_layer(a.shape[1:]) for a in per_layer_args])

    grid_spec = pltpu.PrefetchScalarGridSpec(
        num_scalar_prefetch=0,
        grid=(B // tb, num_layers),
        in_specs=in_specs,
        out_specs=pl.BlockSpec((tb, H), lambda b, l: (b, 0)),
    )

    # Generation-aware VMEM limit (48 MiB cap, <= 3/4 of physical VMEM — v7x has 64 MiB).
    try:
        vmem_cap = pltpu.get_tpu_info().vmem_capacity_bytes
    except Exception:
        vmem_cap = 64 * 1024 * 1024
    vmem_limit = min(48 * 1024 * 1024, int(0.75 * vmem_cap))

    return pl.pallas_call(
        decoder_kernel,
        grid_spec=grid_spec,
        out_shape=jax.ShapeDtypeStruct((B, H), jnp.float32),
        compiler_params=pltpu.CompilerParams(
            dimension_semantics=("parallel", "arbitrary"),
            vmem_limit_bytes=vmem_limit,
        ),
    )(cls_embedding.astype(f32), mem2, bias, rmat,
      params["lnf_g"].astype(f32), params["lnf_b"].astype(f32), *per_layer_args)


# ----------------------- deterministic parameter init ------------------------

def init_decoder_params(key, num_layers, H, F):
    ks = iter(jax.random.split(key, 64))

    def w(shape, scale=0.02):
        return scale * jax.random.normal(next(ks), shape, jnp.float32)

    def ln_g(shape):
        return 1.0 + 0.1 * jax.random.normal(next(ks), shape, jnp.float32)

    def ln_b(shape):
        return 0.1 * jax.random.normal(next(ks), shape, jnp.float32)

    Lr = num_layers
    params = {
        "ln1_g": ln_g((Lr, 1, H)), "ln1_b": ln_b((Lr, 1, H)),
        "sa_wv": w((Lr, H, H)), "sa_bv": w((Lr, 1, H)),
        "sa_wo": w((Lr, H, H)), "sa_bo": w((Lr, 1, H)),
        "ln2_g": ln_g((Lr, 1, H)), "ln2_b": ln_b((Lr, 1, H)),
        "ca_wq": w((Lr, H, H)), "ca_bq": w((Lr, 1, H)),
        "ca_wk": w((Lr, H, H)), "ca_bk": w((Lr, 1, H)),
        "ca_wv": w((Lr, H, H)), "ca_bv": w((Lr, 1, H)),
        "ca_wo": w((Lr, H, H)), "ca_bo": w((Lr, 1, H)),
        "ln3_g": ln_g((Lr, 1, H)), "ln3_b": ln_b((Lr, 1, H)),
        "ff_w1": w((Lr, H, F)), "ff_b1": w((Lr, 1, F)),
        "ff_w2": w((Lr, F, H)), "ff_b2": w((Lr, 1, H)),
        "lnf_g": ln_g((1, H)), "lnf_b": ln_b((1, H)),
    }
    # Declared by __init__ but provably inert (query length 1 => attn weight == 1).
    params["_unused_sa_wq"] = w((Lr, H, H))
    params["_unused_sa_bq"] = w((Lr, 1, H))
    params["_unused_sa_wk"] = w((Lr, H, H))
    params["_unused_sa_bk"] = w((Lr, 1, H))
    return params


# ------------------------------ pure-JAX reference ---------------------------

def reference_decoder(txt_id, cls_embedding, encoder_embedding, padding_idx,
                      params, num_heads):
    def ln(x, g, b, eps=1e-6):
        mu = jnp.mean(x, axis=-1, keepdims=True)
        var = jnp.mean(jnp.square(x - mu), axis=-1, keepdims=True)
        return (x - mu) / jnp.sqrt(var + eps) * g + b

    def gelu(x):
        return 0.5 * x * (1 + jnp.tanh(math.sqrt(2 / math.pi) * (x + 0.044715 * x ** 3)))

    p = params
    mask = (txt_id[:, 1:] == padding_idx)                       # [B, L]
    B, L, H = encoder_embedding.shape
    nh, dph = num_heads, H // num_heads
    x = cls_embedding.astype(jnp.float32)
    enc = encoder_embedding.astype(jnp.float32)

    for i in range(p["ln1_g"].shape[0]):
        xn = ln(x, p["ln1_g"][i, 0], p["ln1_b"][i, 0])
        v = xn @ p["sa_wv"][i] + p["sa_bv"][i, 0]
        q = v @ p["sa_wo"][i] + p["sa_bo"][i, 0] + x
        qn = ln(q, p["ln2_g"][i, 0], p["ln2_b"][i, 0])
        qp = (qn @ p["ca_wq"][i] + p["ca_bq"][i, 0]) / math.sqrt(dph)
        k = enc @ p["ca_wk"][i] + p["ca_bk"][i, 0]
        vv = enc @ p["ca_wv"][i] + p["ca_bv"][i, 0]
        qh = qp.reshape(B, nh, dph)
        kh = k.reshape(B, L, nh, dph)
        vh = vv.reshape(B, L, nh, dph)
        s = jnp.einsum("bhd,blhd->bhl", qh, kh)
        s = jnp.where(mask[:, None, :], -1e18, s)
        a = jax.nn.softmax(s, axis=-1)
        ctx = jnp.einsum("bhl,blhd->bhd", a, vh).reshape(B, H)
        mid = ctx @ p["ca_wo"][i] + p["ca_bo"][i, 0] + q
        mn = ln(mid, p["ln3_g"][i, 0], p["ln3_b"][i, 0])
        inter = gelu(mn @ p["ff_w1"][i] + p["ff_b1"][i, 0])
        x = inter @ p["ff_w2"][i] + p["ff_b2"][i, 0] + mid
    return ln(x, p["lnf_g"][0], p["lnf_b"][0])


# ------------------------------------ main ------------------------------------

if __name__ == "__main__":
    # NOTE: toy shapes — production H/F should be multiples of 128 (and tb of 8/16)
    # for lane/sublane-aligned layouts; the small config here is purely layout-bound.
    B, L, H, HEADS, FF, LAYERS = 2, 8, 32, 4, 64, 2
    PADDING_IDX = 0

    key = jax.random.PRNGKey(0)
    k_ids, k_cls, k_enc, k_par = jax.random.split(key, 4)

    txt_id = jax.random.randint(k_ids, (B, L + 1), 1, 10, dtype=jnp.int32)
    txt_id = txt_id.at[:, -2:].set(PADDING_IDX)        # make some padded positions
    cls_embedding = jax.random.normal(k_cls, (B, H), jnp.float32)
    encoder_embedding = jax.random.normal(k_enc, (B, L, H), jnp.float32)

    params = init_decoder_params(k_par, LAYERS, H, FF)

    out = decoder_forward(txt_id, cls_embedding, encoder_embedding,
                          PADDING_IDX, params, HEADS)
    out = jax.block_until_ready(out)

    ref = reference_decoder(txt_id, cls_embedding, encoder_embedding,
                            PADDING_IDX, params, HEADS)
    # Kernel stores matmul weights, memory bank and the large attention intermediates
    # in bf16 (f32 accumulation / f32 softmax statistics); small quantization drift vs.
    # the pure-f32 reference is expected and documented.
    np.testing.assert_allclose(np.asarray(out), np.asarray(ref),
                               rtol=2e-2, atol=2e-2)
    print("KERNEL_OK")
</pallas_src>

<mosaic_0001>
module attributes {stable_mosaic.version = 11 : i64} {
  func.func @decoder_kernel(%arg0: i32, %arg1: i32, %arg2: memref<2x32xf32, #tpu.memory_space<vmem>>, %arg3: memref<16x32xbf16, #tpu.memory_space<vmem>>, %arg4: memref<2x8xf32, #tpu.memory_space<vmem>>, %arg5: memref<32x32xbf16, #tpu.memory_space<vmem>>, %arg6: memref<1x32xf32, #tpu.memory_space<vmem>>, %arg7: memref<1x32xf32, #tpu.memory_space<vmem>>, %arg8: memref<1x12x32xf32, #tpu.memory_space<vmem>>, %arg9: memref<1x32x32xbf16, #tpu.memory_space<vmem>>, %arg10: memref<1x32x32xbf16, #tpu.memory_space<vmem>>, %arg11: memref<1x32x64xbf16, #tpu.memory_space<vmem>>, %arg12: memref<1x32x32xbf16, #tpu.memory_space<vmem>>, %arg13: memref<1x32x64xbf16, #tpu.memory_space<vmem>>, %arg14: memref<1x1x64xf32, #tpu.memory_space<vmem>>, %arg15: memref<1x64x32xbf16, #tpu.memory_space<vmem>>, %arg16: memref<2x32xf32, #tpu.memory_space<vmem>>) attributes {dimension_semantics = [#tpu.dimension_semantics<parallel>, #tpu.dimension_semantics<arbitrary>], iteration_bounds = array<i64: 1, 2>, scalar_prefetch = 0 : i64, scratch_operands = 0 : i64, tpu.core_type = #tpu.core_type<tc>, window_params = [{transform_indices = @transform_0, window_bounds = array<i64: 2, 32>}, {transform_indices = @transform_1, window_bounds = array<i64: 16, 32>}, {transform_indices = @transform_2, window_bounds = array<i64: 2, 8>}, {pipeline_mode = #tpu.pipeline_mode<synchronous>, transform_indices = @transform_3, window_bounds = array<i64: 32, 32>}, {pipeline_mode = #tpu.pipeline_mode<synchronous>, transform_indices = @transform_4, window_bounds = array<i64: 1, 32>}, {pipeline_mode = #tpu.pipeline_mode<synchronous>, transform_indices = @transform_5, window_bounds = array<i64: 1, 32>}, {transform_indices = @transform_6, window_bounds = array<i64: 1, 12, 32>}, {transform_indices = @transform_7, window_bounds = array<i64: 1, 32, 32>}, {transform_indices = @transform_8, window_bounds = array<i64: 1, 32, 32>}, {transform_indices = @transform_9, window_bounds = array<i64: 1, 32, 64>}, {transform_indices = @transform_10, window_bounds = array<i64: 1, 32, 32>}, {transform_indices = @transform_11, window_bounds = array<i64: 1, 32, 64>}, {transform_indices = @transform_12, window_bounds = array<i64: 1, 1, 64>}, {transform_indices = @transform_13, window_bounds = array<i64: 1, 64, 32>}, {transform_indices = @transform_14, window_bounds = array<i64: 2, 32>}]} {
    %c0_i32 = arith.constant 0 : i32
    %0 = arith.cmpi eq, %arg1, %c0_i32 : i32
    %1 = arith.extui %0 : i1 to i32
    %c0_i32_0 = arith.constant 0 : i32
    %2 = arith.cmpi ne, %1, %c0_i32_0 : i32
    scf.if %2 {
      %c0_63 = arith.constant 0 : index
      %c0_64 = arith.constant 0 : index
      %176 = vector.load %arg2[%c0_63, %c0_64] : memref<2x32xf32, #tpu.memory_space<vmem>>, vector<2x32xf32>
      %c0_65 = arith.constant 0 : index
      %c0_66 = arith.constant 0 : index
      %177 = vector.load %arg16[%c0_65, %c0_66] : memref<2x32xf32, #tpu.memory_space<vmem>>, vector<2x32xf32>
      tpu.vector_store %arg16[%c0_65, %c0_66], %176 {strides = array<i32>} : memref<2x32xf32, #tpu.memory_space<vmem>>, vector<2x32xf32>,
    } else {
    }
    %c0 = arith.constant 0 : index
    %c0_1 = arith.constant 0 : index
    %3 = vector.load %arg16[%c0, %c0_1] : memref<2x32xf32, #tpu.memory_space<vmem>>, vector<2x32xf32>
    %c0_2 = arith.constant 0 : index
    %c0_3 = arith.constant 0 : index
    %c0_4 = arith.constant 0 : index
    %4 = vector.load %arg8[%c0_2, %c0_3, %c0_4] : memref<1x12x32xf32, #tpu.memory_space<vmem>>, vector<1x12x32xf32>
    %5 = vector.shape_cast %4 : vector<1x12x32xf32> to vector<12x32xf32>
    %6 = vector.extract_strided_slice %5 {offsets = [0, 0], sizes = [1, 32], strides = [1, 1]} : vector<12x32xf32> to vector<1x32xf32>
    %7 = vector.extract_strided_slice %5 {offsets = [1, 0], sizes = [1, 32], strides = [1, 1]} : vector<12x32xf32> to vector<1x32xf32>
    %8 = vector.extract_strided_slice %5 {offsets = [2, 0], sizes = [1, 32], strides = [1, 1]} : vector<12x32xf32> to vector<1x32xf32>
    %9 = vector.extract_strided_slice %5 {offsets = [3, 0], sizes = [1, 32], strides = [1, 1]} : vector<12x32xf32> to vector<1x32xf32>
    %10 = vector.extract_strided_slice %5 {offsets = [4, 0], sizes = [1, 32], strides = [1, 1]} : vector<12x32xf32> to vector<1x32xf32>
    %11 = vector.extract_strided_slice %5 {offsets = [5, 0], sizes = [1, 32], strides = [1, 1]} : vector<12x32xf32> to vector<1x32xf32>
    %12 = vector.extract_strided_slice %5 {offsets = [6, 0], sizes = [1, 32], strides = [1, 1]} : vector<12x32xf32> to vector<1x32xf32>
    %13 = vector.extract_strided_slice %5 {offsets = [7, 0], sizes = [1, 32], strides = [1, 1]} : vector<12x32xf32> to vector<1x32xf32>
    %14 = vector.extract_strided_slice %5 {offsets = [8, 0], sizes = [1, 32], strides = [1, 1]} : vector<12x32xf32> to vector<1x32xf32>
    %15 = vector.extract_strided_slice %5 {offsets = [9, 0], sizes = [1, 32], strides = [1, 1]} : vector<12x32xf32> to vector<1x32xf32>
    %16 = vector.extract_strided_slice %5 {offsets = [10, 0], sizes = [1, 32], strides = [1, 1]} : vector<12x32xf32> to vector<1x32xf32>
    %17 = vector.extract_strided_slice %5 {offsets = [11, 0], sizes = [1, 32], strides = [1, 1]} : vector<12x32xf32> to vector<1x32xf32>
    %cst = arith.constant dense<0.000000e+00> : vector<2xf32>
    %18 = vector.multi_reduction <add>, %3, %cst [1] : vector<2x32xf32> to vector<2xf32>
    %19 = vector.shape_cast %18 : vector<2xf32> to vector<2x1xf32>
    %cst_5 = arith.constant 3.200000e+01 : f32
    %20 = vector.broadcast %cst_5 : f32 to vector<2x1xf32>
    %21 = arith.divf %19, %20 : vector<2x1xf32>
    %22 = vector.broadcast %21 : vector<2x1xf32> to vector<2x32xf32>
    %23 = arith.subf %3, %22 : vector<2x32xf32>
    %24 = arith.mulf %23, %23 : vector<2x32xf32>
    %cst_6 = arith.constant dense<0.000000e+00> : vector<2xf32>
    %25 = vector.multi_reduction <add>, %24, %cst_6 [1] : vector<2x32xf32> to vector<2xf32>
    %26 = vector.shape_cast %25 : vector<2xf32> to vector<2x1xf32>
    %cst_7 = arith.constant 3.200000e+01 : f32
    %27 = vector.broadcast %cst_7 : f32 to vector<2x1xf32>
    %28 = arith.divf %26, %27 : vector<2x1xf32>
    %29 = vector.broadcast %21 : vector<2x1xf32> to vector<2x32xf32>
    %30 = arith.subf %3, %29 : vector<2x32xf32>
    %cst_8 = arith.constant 9.99999997E-7 : f32
    %31 = vector.broadcast %cst_8 : f32 to vector<2x1xf32>
    %32 = arith.addf %28, %31 : vector<2x1xf32>
    %33 = math.rsqrt %32 : vector<2x1xf32>
    %34 = vector.broadcast %33 : vector<2x1xf32> to vector<2x32xf32>
    %35 = arith.mulf %30, %34 : vector<2x32xf32>
    %36 = vector.broadcast %6 : vector<1x32xf32> to vector<2x32xf32>
    %37 = arith.mulf %35, %36 : vector<2x32xf32>
    %38 = vector.broadcast %7 : vector<1x32xf32> to vector<2x32xf32>
    %39 = arith.addf %37, %38 : vector<2x32xf32>
    %40 = arith.truncf %39 : vector<2x32xf32> to vector<2x32xbf16>
    %c0_9 = arith.constant 0 : index
    %c0_10 = arith.constant 0 : index
    %c0_11 = arith.constant 0 : index
    %41 = vector.load %arg9[%c0_9, %c0_10, %c0_11] : memref<1x32x32xbf16, #tpu.memory_space<vmem>>, vector<1x32x32xbf16>
    %42 = vector.shape_cast %41 : vector<1x32x32xbf16> to vector<32x32xbf16>
    %cst_12 = arith.constant dense<0.000000e+00> : vector<2x32xf32>
    %43 = tpu.matmul %40, %42, %cst_12 {dimension_numbers = #tpu.dot_dimension_numbers<[1], [0], [0], [1], [0, 0, 1, 1], [], []>} : vector<2x32xbf16>, vector<32x32xbf16>, vector<2x32xf32> -> vector<2x32xf32>
    %44 = vector.broadcast %8 : vector<1x32xf32> to vector<2x32xf32>
    %45 = arith.addf %43, %44 : vector<2x32xf32>
    %46 = arith.addf %45, %3 : vector<2x32xf32>
    %cst_13 = arith.constant dense<0.000000e+00> : vector<2xf32>
    %47 = vector.multi_reduction <add>, %46, %cst_13 [1] : vector<2x32xf32> to vector<2xf32>
    %48 = vector.shape_cast %47 : vector<2xf32> to vector<2x1xf32>
    %cst_14 = arith.constant 3.200000e+01 : f32
    %49 = vector.broadcast %cst_14 : f32 to vector<2x1xf32>
    %50 = arith.divf %48, %49 : vector<2x1xf32>
    %51 = vector.broadcast %50 : vector<2x1xf32> to vector<2x32xf32>
    %52 = arith.subf %46, %51 : vector<2x32xf32>
    %53 = arith.mulf %52, %52 : vector<2x32xf32>
    %cst_15 = arith.constant dense<0.000000e+00> : vector<2xf32>
    %54 = vector.multi_reduction <add>, %53, %cst_15 [1] : vector<2x32xf32> to vector<2xf32>
    %55 = vector.shape_cast %54 : vector<2xf32> to vector<2x1xf32>
    %cst_16 = arith.constant 3.200000e+01 : f32
    %56 = vector.broadcast %cst_16 : f32 to vector<2x1xf32>
    %57 = arith.divf %55, %56 : vector<2x1xf32>
    %58 = vector.broadcast %50 : vector<2x1xf32> to vector<2x32xf32>
    %59 = arith.subf %46, %58 : vector<2x32xf32>
    %cst_17 = arith.constant 9.99999997E-7 : f32
    %60 = vector.broadcast %cst_17 : f32 to vector<2x1xf32>
    %61 = arith.addf %57, %60 : vector<2x1xf32>
    %62 = math.rsqrt %61 : vector<2x1xf32>
    %63 = vector.broadcast %62 : vector<2x1xf32> to vector<2x32xf32>
    %64 = arith.mulf %59, %63 : vector<2x32xf32>
    %65 = vector.broadcast %9 : vector<1x32xf32> to vector<2x32xf32>
    %66 = arith.mulf %64, %65 : vector<2x32xf32>
    %67 = vector.broadcast %10 : vector<1x32xf32> to vector<2x32xf32>
    %68 = arith.addf %66, %67 : vector<2x32xf32>
    %69 = arith.truncf %68 : vector<2x32xf32> to vector<2x32xbf16>
    %c0_18 = arith.constant 0 : index
    %c0_19 = arith.constant 0 : index
    %c0_20 = arith.constant 0 : index
    %70 = vector.load %arg10[%c0_18, %c0_19, %c0_20] : memref<1x32x32xbf16, #tpu.memory_space<vmem>>, vector<1x32x32xbf16>
    %71 = vector.shape_cast %70 : vector<1x32x32xbf16> to vector<32x32xbf16>
    %cst_21 = arith.constant dense<0.000000e+00> : vector<2x32xf32>
    %72 = tpu.matmul %69, %71, %cst_21 {dimension_numbers = #tpu.dot_dimension_numbers<[1], [0], [0], [1], [0, 0, 1, 1], [], []>} : vector<2x32xbf16>, vector<32x32xbf16>, vector<2x32xf32> -> vector<2x32xf32>
    %73 = vector.broadcast %11 : vector<1x32xf32> to vector<2x32xf32>
    %74 = arith.addf %72, %73 : vector<2x32xf32>
    %75 = arith.truncf %74 : vector<2x32xf32> to vector<2x32xbf16>
    %c0_22 = arith.constant 0 : index
    %c0_23 = arith.constant 0 : index
    %76 = vector.load %arg3[%c0_22, %c0_23] : memref<16x32xbf16, #tpu.memory_space<vmem>>, vector<16x32xbf16>
    %c0_24 = arith.constant 0 : index
    %c0_25 = arith.constant 0 : index
    %c0_26 = arith.constant 0 : index
    %77 = vector.load %arg11[%c0_24, %c0_25, %c0_26] : memref<1x32x64xbf16, #tpu.memory_space<vmem>>, vector<1x32x64xbf16>
    %78 = vector.shape_cast %77 : vector<1x32x64xbf16> to vector<32x64xbf16>
    %cst_27 = arith.constant dense<0.000000e+00> : vector<16x64xf32>
    %79 = tpu.matmul %76, %78, %cst_27 {dimension_numbers = #tpu.dot_dimension_numbers<[1], [0], [0], [1], [0, 0, 1, 1], [], []>} : vector<16x32xbf16>, vector<32x64xbf16>, vector<16x64xf32> -> vector<16x64xf32>
    %80 = vector.extract_strided_slice %79 {offsets = [0, 0], sizes = [16, 32], strides = [1, 1]} : vector<16x64xf32> to vector<16x32xf32>
    %81 = vector.broadcast %12 : vector<1x32xf32> to vector<16x32xf32>
    %82 = arith.addf %80, %81 : vector<16x32xf32>
    %83 = arith.truncf %82 : vector<16x32xf32> to vector<16x32xbf16>
    %84 = vector.shape_cast %83 : vector<16x32xbf16> to vector<2x8x32xbf16>
    %85 = vector.extract_strided_slice %79 {offsets = [0, 32], sizes = [16, 32], strides = [1, 1]} : vector<16x64xf32> to vector<16x32xf32>
    %86 = vector.broadcast %13 : vector<1x32xf32> to vector<16x32xf32>
    %87 = arith.addf %85, %86 : vector<16x32xf32>
    %88 = arith.truncf %87 : vector<16x32xf32> to vector<16x32xbf16>
    %89 = vector.shape_cast %88 : vector<16x32xbf16> to vector<2x8x32xbf16>
    %90 = vector.shape_cast %75 : vector<2x32xbf16> to vector<2x1x32xbf16>
    %91 = vector.broadcast %90 : vector<2x1x32xbf16> to vector<2x8x32xbf16>
    %92 = arith.mulf %91, %84 : vector<2x8x32xbf16>
    %93 = vector.shape_cast %92 : vector<2x8x32xbf16> to vector<16x32xbf16>
    %c0_28 = arith.constant 0 : index
    %c0_29 = arith.constant 0 : index
    %94 = vector.load %arg5[%c0_28, %c0_29] : memref<32x32xbf16, #tpu.memory_space<vmem>>, vector<32x32xbf16>
    %cst_30 = arith.constant dense<0.000000e+00> : vector<16x32xf32>
    %95 = tpu.matmul %93, %94, %cst_30 {dimension_numbers = #tpu.dot_dimension_numbers<[1], [0], [0], [1], [0, 0, 1, 1], [], []>} : vector<16x32xbf16>, vector<32x32xbf16>, vector<16x32xf32> -> vector<16x32xf32>
    %96 = vector.shape_cast %95 : vector<16x32xf32> to vector<2x8x32xf32>
    %c0_31 = arith.constant 0 : index
    %c0_32 = arith.constant 0 : index
    %97 = vector.load %arg4[%c0_31, %c0_32] : memref<2x8xf32, #tpu.memory_space<vmem>>, vector<2x8xf32>
    %98 = vector.shape_cast %97 : vector<2x8xf32> to vector<2x8x1xf32>
    %99 = vector.broadcast %98 : vector<2x8x1xf32> to vector<2x8x32xf32>
    %100 = arith.addf %96, %99 : vector<2x8x32xf32>
    %cst_33 = arith.constant dense<0xFF800000> : vector<2x32xf32>
    %101 = vector.multi_reduction <maximumf>, %100, %cst_33 [1] : vector<2x8x32xf32> to vector<2x32xf32>
    %102 = vector.shape_cast %101 : vector<2x32xf32> to vector<2x1x32xf32>
    %103 = vector.broadcast %102 : vector<2x1x32xf32> to vector<2x8x32xf32>
    %104 = arith.subf %100, %103 : vector<2x8x32xf32>
    %105 = math.exp %104 : vector<2x8x32xf32>
    %cst_34 = arith.constant dense<0.000000e+00> : vector<2x32xf32>
    %106 = vector.multi_reduction <add>, %105, %cst_34 [1] : vector<2x8x32xf32> to vector<2x32xf32>
    %107 = vector.shape_cast %106 : vector<2x32xf32> to vector<2x1x32xf32>
    %108 = tpu.reciprocal %107 {approx = true} : vector<2x1x32xf32> -> vector<2x1x32xf32>
    %109 = vector.broadcast %108 : vector<2x1x32xf32> to vector<2x8x32xf32>
    %110 = arith.mulf %105, %109 : vector<2x8x32xf32>
    %111 = arith.truncf %110 : vector<2x8x32xf32> to vector<2x8x32xbf16>
    %112 = arith.mulf %111, %89 : vector<2x8x32xbf16>
    %113 = arith.extf %112 : vector<2x8x32xbf16> to vector<2x8x32xf32>
    %cst_35 = arith.constant dense<0.000000e+00> : vector<2x32xf32>
    %114 = vector.multi_reduction <add>, %113, %cst_35 [1] : vector<2x8x32xf32> to vector<2x32xf32>
    %115 = arith.truncf %114 : vector<2x32xf32> to vector<2x32xbf16>
    %c0_36 = arith.constant 0 : index
    %c0_37 = arith.constant 0 : index
    %c0_38 = arith.constant 0 : index
    %116 = vector.load %arg12[%c0_36, %c0_37, %c0_38] : memref<1x32x32xbf16, #tpu.memory_space<vmem>>, vector<1x32x32xbf16>
    %117 = vector.shape_cast %116 : vector<1x32x32xbf16> to vector<32x32xbf16>
    %cst_39 = arith.constant dense<0.000000e+00> : vector<2x32xf32>
    %118 = tpu.matmul %115, %117, %cst_39 {dimension_numbers = #tpu.dot_dimension_numbers<[1], [0], [0], [1], [0, 0, 1, 1], [], []>} : vector<2x32xbf16>, vector<32x32xbf16>, vector<2x32xf32> -> vector<2x32xf32>
    %119 = vector.broadcast %14 : vector<1x32xf32> to vector<2x32xf32>
    %120 = arith.addf %118, %119 : vector<2x32xf32>
    %121 = arith.addf %120, %46 : vector<2x32xf32>
    %cst_40 = arith.constant dense<0.000000e+00> : vector<2xf32>
    %122 = vector.multi_reduction <add>, %121, %cst_40 [1] : vector<2x32xf32> to vector<2xf32>
    %123 = vector.shape_cast %122 : vector<2xf32> to vector<2x1xf32>
    %cst_41 = arith.constant 3.200000e+01 : f32
    %124 = vector.broadcast %cst_41 : f32 to vector<2x1xf32>
    %125 = arith.divf %123, %124 : vector<2x1xf32>
    %126 = vector.broadcast %125 : vector<2x1xf32> to vector<2x32xf32>
    %127 = arith.subf %121, %126 : vector<2x32xf32>
    %128 = arith.mulf %127, %127 : vector<2x32xf32>
    %cst_42 = arith.constant dense<0.000000e+00> : vector<2xf32>
    %129 = vector.multi_reduction <add>, %128, %cst_42 [1] : vector<2x32xf32> to vector<2xf32>
    %130 = vector.shape_cast %129 : vector<2xf32> to vector<2x1xf32>
    %cst_43 = arith.constant 3.200000e+01 : f32
    %131 = vector.broadcast %cst_43 : f32 to vector<2x1xf32>
    %132 = arith.divf %130, %131 : vector<2x1xf32>
    %133 = vector.broadcast %125 : vector<2x1xf32> to vector<2x32xf32>
    %134 = arith.subf %121, %133 : vector<2x32xf32>
    %cst_44 = arith.constant 9.99999997E-7 : f32
    %135 = vector.broadcast %cst_44 : f32 to vector<2x1xf32>
    %136 = arith.addf %132, %135 : vector<2x1xf32>
    %137 = math.rsqrt %136 : vector<2x1xf32>
    %138 = vector.broadcast %137 : vector<2x1xf32> to vector<2x32xf32>
    %139 = arith.mulf %134, %138 : vector<2x32xf32>
    %140 = vector.broadcast %15 : vector<1x32xf32> to vector<2x32xf32>
    %141 = arith.mulf %139, %140 : vector<2x32xf32>
    %142 = vector.broadcast %16 : vector<1x32xf32> to vector<2x32xf32>
    %143 = arith.addf %141, %142 : vector<2x32xf32>
    %144 = arith.truncf %143 : vector<2x32xf32> to vector<2x32xbf16>
    %c0_45 = arith.constant 0 : index
    %c0_46 = arith.constant 0 : index
    %c0_47 = arith.constant 0 : index
    %145 = vector.load %arg13[%c0_45, %c0_46, %c0_47] : memref<1x32x64xbf16, #tpu.memory_space<vmem>>, vector<1x32x64xbf16>
    %146 = vector.shape_cast %145 : vector<1x32x64xbf16> to vector<32x64xbf16>
    %cst_48 = arith.constant dense<0.000000e+00> : vector<2x64xf32>
    %147 = tpu.matmul %144, %146, %cst_48 {dimension_numbers = #tpu.dot_dimension_numbers<[1], [0], [0], [1], [0, 0, 1, 1], [], []>} : vector<2x32xbf16>, vector<32x64xbf16>, vector<2x64xf32> -> vector<2x64xf32>
    %c0_49 = arith.constant 0 : index
    %c0_50 = arith.constant 0 : index
    %c0_51 = arith.constant 0 : index
    %148 = vector.load %arg14[%c0_49, %c0_50, %c0_51] : memref<1x1x64xf32, #tpu.memory_space<vmem>>, vector<1x1x64xf32>
    %149 = vector.shape_cast %148 : vector<1x1x64xf32> to vector<1x64xf32>
    %150 = vector.broadcast %149 : vector<1x64xf32> to vector<2x64xf32>
    %151 = arith.addf %147, %150 : vector<2x64xf32>
    %cst_52 = arith.constant 5.000000e-01 : f32
    %152 = vector.broadcast %cst_52 : f32 to vector<2x64xf32>
    %153 = arith.mulf %152, %151 : vector<2x64xf32>
    %cst_53 = arith.constant 4.471500e-02 : f32
    %154 = vector.broadcast %cst_53 : f32 to vector<2x64xf32>
    %155 = arith.mulf %154, %151 : vector<2x64xf32>
    %156 = arith.mulf %155, %151 : vector<2x64xf32>
    %157 = arith.mulf %156, %151 : vector<2x64xf32>
    %158 = arith.addf %151, %157 : vector<2x64xf32>
    %cst_54 = arith.constant 0.797884583 : f32
    %159 = vector.broadcast %cst_54 : f32 to vector<2x64xf32>
    %160 = arith.mulf %159, %158 : vector<2x64xf32>
    %161 = math.tanh %160 : vector<2x64xf32>
    %cst_55 = arith.constant 1.000000e+00 : f32
    %162 = vector.broadcast %cst_55 : f32 to vector<2x64xf32>
    %163 = arith.addf %162, %161 : vector<2x64xf32>
    %164 = arith.mulf %153, %163 : vector<2x64xf32>
    %165 = arith.truncf %164 : vector<2x64xf32> to vector<2x64xbf16>
    %c0_56 = arith.constant 0 : index
    %c0_57 = arith.constant 0 : index
    %c0_58 = arith.constant 0 : index
    %166 = vector.load %arg15[%c0_56, %c0_57, %c0_58] : memref<1x64x32xbf16, #tpu.memory_space<vmem>>, vector<1x64x32xbf16>
    %167 = vector.shape_cast %166 : vector<1x64x32xbf16> to vector<64x32xbf16>
    %cst_59 = arith.constant dense<0.000000e+00> : vector<2x32xf32>
    %168 = tpu.matmul %165, %167, %cst_59 {dimension_numbers = #tpu.dot_dimension_numbers<[1], [0], [0], [1], [0, 0, 1, 1], [], []>} : vector<2x64xbf16>, vector<64x32xbf16>, vector<2x32xf32> -> vector<2x32xf32>
    %169 = vector.broadcast %17 : vector<1x32xf32> to vector<2x32xf32>
    %170 = arith.addf %168, %169 : vector<2x32xf32>
    %171 = arith.addf %170, %121 : vector<2x32xf32>
    %c0_60 = arith.constant 0 : index
    %c0_61 = arith.constant 0 : index
    %172 = vector.load %arg16[%c0_60, %c0_61] : memref<2x32xf32, #tpu.memory_space<vmem>>, vector<2x32xf32>
    tpu.vector_store %arg16[%c0_60, %c0_61], %171 {strides = array<i32>} : memref<2x32xf32, #tpu.memory_space<vmem>>, vector<2x32xf32>,
    %c1_i32 = arith.constant 1 : i32
    %173 = arith.cmpi eq, %arg1, %c1_i32 : i32
    %174 = arith.extui %173 : i1 to i32
    %c0_i32_62 = arith.constant 0 : i32
    %175 = arith.cmpi ne, %174, %c0_i32_62 : i32
    scf.if %175 {
      %c0_63 = arith.constant 0 : index
      %c0_64 = arith.constant 0 : index
      %176 = vector.load %arg6[%c0_63, %c0_64] : memref<1x32xf32, #tpu.memory_space<vmem>>, vector<1x32xf32>
      %c0_65 = arith.constant 0 : index
      %c0_66 = arith.constant 0 : index
      %177 = vector.load %arg7[%c0_65, %c0_66] : memref<1x32xf32, #tpu.memory_space<vmem>>, vector<1x32xf32>
      %cst_67 = arith.constant dense<0.000000e+00> : vector<2xf32>
      %178 = vector.multi_reduction <add>, %171, %cst_67 [1] : vector<2x32xf32> to vector<2xf32>
      %179 = vector.shape_cast %178 : vector<2xf32> to vector<2x1xf32>
      %cst_68 = arith.constant 3.200000e+01 : f32
      %180 = vector.broadcast %cst_68 : f32 to vector<2x1xf32>
      %181 = arith.divf %179, %180 : vector<2x1xf32>
      %182 = vector.broadcast %181 : vector<2x1xf32> to vector<2x32xf32>
      %183 = arith.subf %171, %182 : vector<2x32xf32>
      %184 = arith.mulf %183, %183 : vector<2x32xf32>
      %cst_69 = arith.constant dense<0.000000e+00> : vector<2xf32>
      %185 = vector.multi_reduction <add>, %184, %cst_69 [1] : vector<2x32xf32> to vector<2xf32>
      %186 = vector.shape_cast %185 : vector<2xf32> to vector<2x1xf32>
      %cst_70 = arith.constant 3.200000e+01 : f32
      %187 = vector.broadcast %cst_70 : f32 to vector<2x1xf32>
      %188 = arith.divf %186, %187 : vector<2x1xf32>
      %189 = vector.broadcast %181 : vector<2x1xf32> to vector<2x32xf32>
      %190 = arith.subf %171, %189 : vector<2x32xf32>
      %cst_71 = arith.constant 9.99999997E-7 : f32
      %191 = vector.broadcast %cst_71 : f32 to vector<2x1xf32>
      %192 = arith.addf %188, %191 : vector<2x1xf32>
      %193 = math.rsqrt %192 : vector<2x1xf32>
      %194 = vector.broadcast %193 : vector<2x1xf32> to vector<2x32xf32>
      %195 = arith.mulf %190, %194 : vector<2x32xf32>
      %196 = vector.broadcast %176 : vector<1x32xf32> to vector<2x32xf32>
      %197 = arith.mulf %195, %196 : vector<2x32xf32>
      %198 = vector.broadcast %177 : vector<1x32xf32> to vector<2x32xf32>
      %199 = arith.addf %197, %198 : vector<2x32xf32>
      %c0_72 = arith.constant 0 : index
      %c0_73 = arith.constant 0 : index
      %200 = vector.load %arg16[%c0_72, %c0_73] : memref<2x32xf32, #tpu.memory_space<vmem>>, vector<2x32xf32>
      tpu.vector_store %arg16[%c0_72, %c0_73], %199 {strides = array<i32>} : memref<2x32xf32, #tpu.memory_space<vmem>>, vector<2x32xf32>,
    } else {
    }
    return
  }
  func.func @transform_0(%arg0: i32, %arg1: i32) -> (i32, i32) {
    %c0_i32 = arith.constant 0 : i32
    %c0_i32_0 = arith.constant 0 : i32
    return %arg0, %c0_i32 : i32, i32
  }
  func.func @transform_1(%arg0: i32, %arg1: i32) -> (i32, i32) {
    %c0_i32 = arith.constant 0 : i32
    %c0_i32_0 = arith.constant 0 : i32
    return %arg0, %c0_i32 : i32, i32
  }
  func.func @transform_2(%arg0: i32, %arg1: i32) -> (i32, i32) {
    %c0_i32 = arith.constant 0 : i32
    %c0_i32_0 = arith.constant 0 : i32
    return %arg0, %c0_i32 : i32, i32
  }
  func.func @transform_3(%arg0: i32, %arg1: i32) -> (i32, i32) {
    %c0_i32 = arith.constant 0 : i32
    %c0_i32_0 = arith.constant 0 : i32
    %c0_i32_1 = arith.constant 0 : i32
    return %c0_i32, %c0_i32_0 : i32, i32
  }
  func.func @transform_4(%arg0: i32, %arg1: i32) -> (i32, i32) {
    %c0_i32 = arith.constant 0 : i32
    %c0_i32_0 = arith.constant 0 : i32
    %c0_i32_1 = arith.constant 0 : i32
    return %c0_i32, %c0_i32_0 : i32, i32
  }
  func.func @transform_5(%arg0: i32, %arg1: i32) -> (i32, i32) {
    %c0_i32 = arith.constant 0 : i32
    %c0_i32_0 = arith.constant 0 : i32
    %c0_i32_1 = arith.constant 0 : i32
    return %c0_i32, %c0_i32_0 : i32, i32
  }
  func.func @transform_6(%arg0: i32, %arg1: i32) -> (i32, i32, i32) {
    %c0_i32 = arith.constant 0 : i32
    %c0_i32_0 = arith.constant 0 : i32
    %c0_i32_1 = arith.constant 0 : i32
    return %arg1, %c0_i32, %c0_i32_0 : i32, i32, i32
  }
  func.func @transform_7(%arg0: i32, %arg1: i32) -> (i32, i32, i32) {
    %c0_i32 = arith.constant 0 : i32
    %c0_i32_0 = arith.constant 0 : i32
    %c0_i32_1 = arith.constant 0 : i32
    return %arg1, %c0_i32, %c0_i32_0 : i32, i32, i32
  }
  func.func @transform_8(%arg0: i32, %arg1: i32) -> (i32, i32, i32) {
    %c0_i32 = arith.constant 0 : i32
    %c0_i32_0 = arith.constant 0 : i32
    %c0_i32_1 = arith.constant 0 : i32
    return %arg1, %c0_i32, %c0_i32_0 : i32, i32, i32
  }
  func.func @transform_9(%arg0: i32, %arg1: i32) -> (i32, i32, i32) {
    %c0_i32 = arith.constant 0 : i32
    %c0_i32_0 = arith.constant 0 : i32
    %c0_i32_1 = arith.constant 0 : i32
    return %arg1, %c0_i32, %c0_i32_0 : i32, i32, i32
  }
  func.func @transform_10(%arg0: i32, %arg1: i32) -> (i32, i32, i32) {
    %c0_i32 = arith.constant 0 : i32
    %c0_i32_0 = arith.constant 0 : i32
    %c0_i32_1 = arith.constant 0 : i32
    return %arg1, %c0_i32, %c0_i32_0 : i32, i32, i32
  }
  func.func @transform_11(%arg0: i32, %arg1: i32) -> (i32, i32, i32) {
    %c0_i32 = arith.constant 0 : i32
    %c0_i32_0 = arith.constant 0 : i32
    %c0_i32_1 = arith.constant 0 : i32
    return %arg1, %c0_i32, %c0_i32_0 : i32, i32, i32
  }
  func.func @transform_12(%arg0: i32, %arg1: i32) -> (i32, i32, i32) {
    %c0_i32 = arith.constant 0 : i32
    %c0_i32_0 = arith.constant 0 : i32
    %c0_i32_1 = arith.constant 0 : i32
    return %arg1, %c0_i32, %c0_i32_0 : i32, i32, i32
  }
  func.func @transform_13(%arg0: i32, %arg1: i32) -> (i32, i32, i32) {
    %c0_i32 = arith.constant 0 : i32
    %c0_i32_0 = arith.constant 0 : i32
    %c0_i32_1 = arith.constant 0 : i32
    return %arg1, %c0_i32, %c0_i32_0 : i32, i32, i32
  }
  func.func @transform_14(%arg0: i32, %arg1: i32) -> (i32, i32) {
    %c0_i32 = arith.constant 0 : i32
    %c0_i32_0 = arith.constant 0 : i32
    return %arg0, %c0_i32 : i32, i32
  }
}

</mosaic_0001>

<llo_original>
// kernel: tpu_custom_call.1
$region0: #{tpu_custom_call.1}
  #allocation0 [shape = 'u32[]', space=smem, size = 0x4, offset = 0x4, fixed_abs, tag = 'smem constant byte address 0x4 - core index']
  #allocation1 [shape = 'u32[144,128]{1,0:T(1,128)}', space=vmem, size = 0x12000, scoped, tag = 'internal scratch']
  %s0 = inlined_call_operand.hbm [shape: f32[2,32], index: 0, kind: input, shape index: {}]
  %s1 = inlined_call_operand.hbm [shape: bf16[16,32], index: 1, kind: input, shape index: {}]
  %s2 = inlined_call_operand.hbm [shape: f32[2,8], index: 2, kind: input, shape index: {}]
  %s3 = inlined_call_operand.hbm [shape: bf16[32,32], index: 3, kind: input, shape index: {}]
  %s4 = inlined_call_operand.vmem [shape: f32[1,32], index: 4, kind: input, shape index: {}]
  %s5 = inlined_call_operand.hbm [shape: f32[1,32], index: 5, kind: input, shape index: {}]
  %s6 = inlined_call_operand.vmem [shape: f32[2,12,32], index: 6, kind: input, shape index: {}]
  %s7 = inlined_call_operand.vmem [shape: bf16[2,32,32], index: 7, kind: input, shape index: {}]
  %s8 = inlined_call_operand.vmem [shape: bf16[2,32,32], index: 8, kind: input, shape index: {}]
  %s9 = inlined_call_operand.vmem [shape: bf16[2,32,64], index: 9, kind: input, shape index: {}]
  %s10 = inlined_call_operand.vmem [shape: bf16[2,32,32], index: 10, kind: input, shape index: {}]
  %s11 = inlined_call_operand.vmem [shape: bf16[2,32,64], index: 11, kind: input, shape index: {}]
  %s12 = inlined_call_operand.vmem [shape: f32[2,1,64], index: 12, kind: input, shape index: {}]
  %s13 = inlined_call_operand.vmem [shape: bf16[2,64,32], index: 13, kind: input, shape index: {}]
  %s14 = inlined_call_operand.hbm [shape: f32[2,32], index: 14, kind: output, shape index: {}]
  %s15 = sld [smem:[#allocation0]]
  $region117: #{tpu_custom_call.1} parent=0
    _
  %s17 = ssub.s32 1, %s15
  %s18 = scalar_select 0, %s17, %s15
  $region1: #{tpu_custom_call.1} parent=0
    #allocation2 [shape = 'u8[1024]{0}', space=vmem, size = 0x400, scoped, tag = 'input window, operand 0, single buffered']
    #allocation3 [shape = 's32[2]{0}', space=sflag, size = 0x8, scoped, tag = 'scoped memory for tpu_custom_call.1']
    #allocation4 [shape = 's32[2]{0}', space=sflag, size = 0x8, scoped, tag = 'scoped memory for tpu_custom_call.1']
    #allocation5 [shape = 'u8[4096]{0}', space=vmem, size = 0x1000, scoped, tag = 'input window, operand 1, single buffered']
    #allocation6 [shape = 's32[1]{0}', space=sflag, size = 0x4, scoped, tag = 'scoped memory for tpu_custom_call.1']
    #allocation7 [shape = 'u8[1024]{0}', space=vmem, size = 0x400, scoped, tag = 'input window, operand 2, single buffered']
    #allocation8 [shape = 'u8[8192]{0}', space=vmem, size = 0x2000, scoped, tag = 'input window, operand 3, single buffered']
    #allocation9 [shape = 's32[1]{0}', space=sflag, size = 0x4, scoped, tag = 'scoped memory for tpu_custom_call.1']
    #allocation10 [shape = 'u8[512]{0}', space=vmem, size = 0x400, scoped, tag = 'input window, operand 5, single buffered']
    #allocation11 [shape = 'u8[1024]{0}', space=vmem, size = 0x400, scoped, tag = 'output window, operand 0, single buffered']
    %19 = vsyncpa [#allocation3], 0
    %20 = vsyncpa [#allocation6], 0
    %21 = vsyncpa [#allocation9], 0
    %22 = vsyncpa [#allocation4], 0
    loop: start=0, step=1, limit=4
    $region2: #{tpu_custom_call.1} parent=1 // loop_pre_header
      _
    $region3: #{tpu_custom_call.1} parent=1 // loop_header
      %s24 = sphi 0, %s28
      %p25 = scmp.ge.s32.totalorder %s24, 4
      %s31 = sphi 0, %s43
      %s32 = sphi 0, %s39
      %s33 = sphi 0, %s31
      %s34 = sphi 0, %s32
      %s35 = sphi 0, %s33
      %s36 = sphi 0, %s34
      %s46 = sphi 0, %s48
      %s49 = sphi 0, %s46
      %s50 = sphi 0, %s49
      %s66 = sphi 0, %s50
      %s72 = sphi 0, %s74
      %s75 = sphi 0, %s72
      %s76 = sphi 0, %s75
      %s92 = sphi 0, %s76
      %s98 = sphi 0, %s100
      %s101 = sphi 0, %s98
      %s102 = sphi 0, %s101
      %s118 = sphi 0, %s102
      %s122 = sphi 0, %s122
      %s124 = sphi 0, %s122
      %s125 = sphi 0, %s124
      %s139 = sphi 0, %s125
      %s143 = sphi 0, %s143
      %s145 = sphi 0, %s143
      %s146 = sphi 0, %s145
      %s160 = sphi 0, %s146
      %s164 = sphi 0, %s164
      %s166 = sphi 0, %s164
      %s167 = sphi 0, %s166
      %s181 = sphi 0, %s167
      %s187 = sphi 0, %s189
      %s190 = sphi 0, %s187
      %s191 = sphi 0, %s190
      %s207 = sphi 0, %s191
      %s213 = sphi 0, %s215
      %s216 = sphi 0, %s213
      %s217 = sphi 0, %s216
      %s233 = sphi 0, %s217
      %s239 = sphi 0, %s241
      %s242 = sphi 0, %s239
      %s243 = sphi 0, %s242
      %s259 = sphi 0, %s243
      %s265 = sphi 0, %s267
      %s268 = sphi 0, %s265
      %s269 = sphi 0, %s268
      %s285 = sphi 0, %s269
      %s291 = sphi 0, %s293
      %s294 = sphi 0, %s291
      %s295 = sphi 0, %s294
      %s311 = sphi 0, %s295
      %s317 = sphi 0, %s319
      %s320 = sphi 0, %s317
      %s321 = sphi 0, %s320
      %s337 = sphi 0, %s321
      %s343 = sphi 0, %s345
      %s346 = sphi 0, %s343
      %s347 = sphi 0, %s346
      %s363 = sphi 0, %s347
      %s369 = sphi 0, %s371
      %s372 = sphi 0, %s369
      %s373 = sphi 0, %s372
      %s389 = sphi 0, %s373
      %s395 = sphi 0, %s397
      %s398 = sphi 0, %s395
      %s399 = sphi 0, %s398
      %s415 = sphi 0, %s399
    $region4: #{tpu_custom_call.1} parent=1 // loop_header_branch
      %27 = sbr.rel (%p25) target = $region8
    $region5: #{tpu_custom_call.1} parent=1 // loop_body
      %s29 = ssub.s32 %s24, 1
      %s30 = ssub.s32 %s24, 2
      %s37 = sadd.s32 1, %s32
      %p38 = scmp.ge.s32.totalorder %s37, 2
      %s39 = scalar_select %p38, 0, %s37
      %s40 = sadd.s32 1, %s31
      %s41 = scalar_select %p38, %s40, %s31
      %p42 = scmp.ge.s32.totalorder %s41, 1
      %s43 = scalar_select %p42, 0, %s41
      %s44 = ssub.s32 %s31, %s43
      %p45 = scmp.eq.s32.totalorder %s44, 0
      %s47 = sadd.s32 %s46, 1
      %s48 = scalar_select %p45, %s46, %s47
      %p51 = pneg %p45
      %p52 = scmp.eq.s32.totalorder %s24, 1
      %p53 = por %p51, %p52
      %p54 = scmp.ne.s32.totalorder %s46, %s49
      %p55 = scmp.eq.s32.totalorder %s24, 0
      %p56 = por %p54, %p55
      %p57 = scmp.ne.s32.totalorder %s46, %s49
      %p58 = scmp.eq.s32.totalorder %s29, 1
      %p59 = por %p57, %p58
      %p60 = scmp.ne.s32.totalorder %s49, %s50
      %p61 = scmp.eq.s32.totalorder %s29, 0
      %p62 = por %p60, %p61
      %p63 = scmp.ne.s32.totalorder %s49, %s50
      %p64 = scmp.eq.s32.totalorder %s30, 1
      %p65 = por %p63, %p64
      %p67 = scmp.ne.s32.totalorder %s50, %s66
      %p68 = scmp.eq.s32.totalorder %s30, 0
      %p69 = por %p67, %p68
      %s70 = ssub.s32 %s31, %s43
      %p71 = scmp.eq.s32.totalorder %s70, 0
      %s73 = sadd.s32 %s72, 1
      %s74 = scalar_select %p71, %s72, %s73
      %p77 = pneg %p71
      %p78 = scmp.eq.s32.totalorder %s24, 1
      %p79 = por %p77, %p78
      %p80 = scmp.ne.s32.totalorder %s72, %s75
      %p81 = scmp.eq.s32.totalorder %s24, 0
      %p82 = por %p80, %p81
      %p83 = scmp.ne.s32.totalorder %s72, %s75
      %p84 = scmp.eq.s32.totalorder %s29, 1
      %p85 = por %p83, %p84
      %p86 = scmp.ne.s32.totalorder %s75, %s76
      %p87 = scmp.eq.s32.totalorder %s29, 0
      %p88 = por %p86, %p87
      %p89 = scmp.ne.s32.totalorder %s75, %s76
      %p90 = scmp.eq.s32.totalorder %s30, 1
      %p91 = por %p89, %p90
      %p93 = scmp.ne.s32.totalorder %s76, %s92
      %p94 = scmp.eq.s32.totalorder %s30, 0
      %p95 = por %p93, %p94
      %s96 = ssub.s32 %s31, %s43
      %p97 = scmp.eq.s32.totalorder %s96, 0
      %s99 = sadd.s32 %s98, 1
      %s100 = scalar_select %p97, %s98, %s99
      %p103 = pneg %p97
      %p104 = scmp.eq.s32.totalorder %s24, 1
      %p105 = por %p103, %p104
      %p106 = scmp.ne.s32.totalorder %s98, %s101
      %p107 = scmp.eq.s32.totalorder %s24, 0
      %p108 = por %p106, %p107
      %p109 = scmp.ne.s32.totalorder %s98, %s101
      %p110 = scmp.eq.s32.totalorder %s29, 1
      %p111 = por %p109, %p110
      %p112 = scmp.ne.s32.totalorder %s101, %s102
      %p113 = scmp.eq.s32.totalorder %s29, 0
      %p114 = por %p112, %p113
      %p115 = scmp.ne.s32.totalorder %s101, %s102
      %p116 = scmp.eq.s32.totalorder %s30, 1
      %p117 = por %p115, %p116
      %p119 = scmp.ne.s32.totalorder %s102, %s118
      %p120 = scmp.eq.s32.totalorder %s30, 0
      %p121 = por %p119, %p120
      %s123 = sadd.s32 %s122, 1
      %p126 = scmp.eq.s32.totalorder %s24, 1
      %p127 = scmp.ne.s32.totalorder %s122, %s124
      %p128 = scmp.eq.s32.totalorder %s24, 0
      %p129 = por %p127, %p128
      %p130 = scmp.ne.s32.totalorder %s122, %s124
      %p131 = scmp.eq.s32.totalorder %s29, 1
      %p132 = por %p130, %p131
      %p133 = scmp.ne.s32.totalorder %s124, %s125
      %p134 = scmp.eq.s32.totalorder %s29, 0
      %p135 = por %p133, %p134
      %p136 = scmp.ne.s32.totalorder %s124, %s125
      %p137 = scmp.eq.s32.totalorder %s30, 1
      %p138 = por %p136, %p137
      %p140 = scmp.ne.s32.totalorder %s125, %s139
      %p141 = scmp.eq.s32.totalorder %s30, 0
      %p142 = por %p140, %p141
      %s144 = sadd.s32 %s143, 1
      %p147 = scmp.eq.s32.totalorder %s24, 1
      %p148 = scmp.ne.s32.totalorder %s143, %s145
      %p149 = scmp.eq.s32.totalorder %s24, 0
      %p150 = por %p148, %p149
      %p151 = scmp.ne.s32.totalorder %s143, %s145
      %p152 = scmp.eq.s32.totalorder %s29, 1
      %p153 = por %p151, %p152
      %p154 = scmp.ne.s32.totalorder %s145, %s146
      %p155 = scmp.eq.s32.totalorder %s29, 0
      %p156 = por %p154, %p155
      %p157 = scmp.ne.s32.totalorder %s145, %s146
      %p158 = scmp.eq.s32.totalorder %s30, 1
      %p159 = por %p157, %p158
      %p161 = scmp.ne.s32.totalorder %s146, %s160
      %p162 = scmp.eq.s32.totalorder %s30, 0
      %p163 = por %p161, %p162
      %s165 = sadd.s32 %s164, 1
      %p168 = scmp.eq.s32.totalorder %s24, 1
      %p169 = scmp.ne.s32.totalorder %s164, %s166
      %p170 = scmp.eq.s32.totalorder %s24, 0
      %p171 = por %p169, %p170
      %p172 = scmp.ne.s32.totalorder %s164, %s166
      %p173 = scmp.eq.s32.totalorder %s29, 1
      %p174 = por %p172, %p173
      %p175 = scmp.ne.s32.totalorder %s166, %s167
      %p176 = scmp.eq.s32.totalorder %s29, 0
      %p177 = por %p175, %p176
      %p178 = scmp.ne.s32.totalorder %s166, %s167
      %p179 = scmp.eq.s32.totalorder %s30, 1
      %p180 = por %p178, %p179
      %p182 = scmp.ne.s32.totalorder %s167, %s181
      %p183 = scmp.eq.s32.totalorder %s30, 0
      %p184 = por %p182, %p183
      %s185 = ssub.s32 %s32, %s39
      %p186 = scmp.eq.s32.totalorder %s185, 0
      %s188 = sadd.s32 %s187, 1
      %s189 = scalar_select %p186, %s187, %s188
      %p192 = pneg %p186
      %p193 = scmp.eq.s32.totalorder %s24, 1
      %p194 = por %p192, %p193
      %p195 = scmp.ne.s32.totalorder %s187, %s190
      %p196 = scmp.eq.s32.totalorder %s24, 0
      %p197 = por %p195, %p196
      %p198 = scmp.ne.s32.totalorder %s187, %s190
      %p199 = scmp.eq.s32.totalorder %s29, 1
      %p200 = por %p198, %p199
      %p201 = scmp.ne.s32.totalorder %s190, %s191
      %p202 = scmp.eq.s32.totalorder %s29, 0
      %p203 = por %p201, %p202
      %p204 = scmp.ne.s32.totalorder %s190, %s191
      %p205 = scmp.eq.s32.totalorder %s30, 1
      %p206 = por %p204, %p205
      %p208 = scmp.ne.s32.totalorder %s191, %s207
      %p209 = scmp.eq.s32.totalorder %s30, 0
      %p210 = por %p208, %p209
      %s211 = ssub.s32 %s32, %s39
      %p212 = scmp.eq.s32.totalorder %s211, 0
      %s214 = sadd.s32 %s213, 1
      %s215 = scalar_select %p212, %s213, %s214
      %p218 = pneg %p212
      %p219 = scmp.eq.s32.totalorder %s24, 1
      %p220 = por %p218, %p219
      %p221 = scmp.ne.s32.totalorder %s213, %s216
      %p222 = scmp.eq.s32.totalorder %s24, 0
      %p223 = por %p221, %p222
      %p224 = scmp.ne.s32.totalorder %s213, %s216
      %p225 = scmp.eq.s32.totalorder %s29, 1
      %p226 = por %p224, %p225
      %p227 = scmp.ne.s32.totalorder %s216, %s217
      %p228 = scmp.eq.s32.totalorder %s29, 0
      %p229 = por %p227, %p228
      %p230 = scmp.ne.s32.totalorder %s216, %s217
      %p231 = scmp.eq.s32.totalorder %s30, 1
      %p232 = por %p230, %p231
      %p234 = scmp.ne.s32.totalorder %s217, %s233
      %p235 = scmp.eq.s32.totalorder %s30, 0
      %p236 = por %p234, %p235
      %s237 = ssub.s32 %s32, %s39
      %p238 = scmp.eq.s32.totalorder %s237, 0
      %s240 = sadd.s32 %s239, 1
      %s241 = scalar_select %p238, %s239, %s240
      %p244 = pneg %p238
      %p245 = scmp.eq.s32.totalorder %s24, 1
      %p246 = por %p244, %p245
      %p247 = scmp.ne.s32.totalorder %s239, %s242
      %p248 = scmp.eq.s32.totalorder %s24, 0
      %p249 = por %p247, %p248
      %p250 = scmp.ne.s32.totalorder %s239, %s242
      %p251 = scmp.eq.s32.totalorder %s29, 1
      %p252 = por %p250, %p251
      %p253 = scmp.ne.s32.totalorder %s242, %s243
      %p254 = scmp.eq.s32.totalorder %s29, 0
      %p255 = por %p253, %p254
      %p256 = scmp.ne.s32.totalorder %s242, %s243
      %p257 = scmp.eq.s32.totalorder %s30, 1
      %p258 = por %p256, %p257
      %p260 = scmp.ne.s32.totalorder %s243, %s259
      %p261 = scmp.eq.s32.totalorder %s30, 0
      %p262 = por %p260, %p261
      %s263 = ssub.s32 %s32, %s39
      %p264 = scmp.eq.s32.totalorder %s263, 0
      %s266 = sadd.s32 %s265, 1
      %s267 = scalar_select %p264, %s265, %s266
      %p270 = pneg %p264
      %p271 = scmp.eq.s32.totalorder %s24, 1
      %p272 = por %p270, %p271
      %p273 = scmp.ne.s32.totalorder %s265, %s268
      %p274 = scmp.eq.s32.totalorder %s24, 0
      %p275 = por %p273, %p274
      %p276 = scmp.ne.s32.totalorder %s265, %s268
      %p277 = scmp.eq.s32.totalorder %s29, 1
      %p278 = por %p276, %p277
      %p279 = scmp.ne.s32.totalorder %s268, %s269
      %p280 = scmp.eq.s32.totalorder %s29, 0
      %p281 = por %p279, %p280
      %p282 = scmp.ne.s32.totalorder %s268, %s269
      %p283 = scmp.eq.s32.totalorder %s30, 1
      %p284 = por %p282, %p283
      %p286 = scmp.ne.s32.totalorder %s269, %s285
      %p287 = scmp.eq.s32.totalorder %s30, 0
      %p288 = por %p286, %p287
      %s289 = ssub.s32 %s32, %s39
      %p290 = scmp.eq.s32.totalorder %s289, 0
      %s292 = sadd.s32 %s291, 1
      %s293 = scalar_select %p290, %s291, %s292
      %p296 = pneg %p290
      %p297 = scmp.eq.s32.totalorder %s24, 1
      %p298 = por %p296, %p297
      %p299 = scmp.ne.s32.totalorder %s291, %s294
      %p300 = scmp.eq.s32.totalorder %s24, 0
      %p301 = por %p299, %p300
      %p302 = scmp.ne.s32.totalorder %s291, %s294
      %p303 = scmp.eq.s32.totalorder %s29, 1
      %p304 = por %p302, %p303
      %p305 = scmp.ne.s32.totalorder %s294, %s295
      %p306 = scmp.eq.s32.totalorder %s29, 0
      %p307 = por %p305, %p306
      %p308 = scmp.ne.s32.totalorder %s294, %s295
      %p309 = scmp.eq.s32.totalorder %s30, 1
      %p310 = por %p308, %p309
      %p312 = scmp.ne.s32.totalorder %s295, %s311
      %p313 = scmp.eq.s32.totalorder %s30, 0
      %p314 = por %p312, %p313
      %s315 = ssub.s32 %s32, %s39
      %p316 = scmp.eq.s32.totalorder %s315, 0
      %s318 = sadd.s32 %s317, 1
      %s319 = scalar_select %p316, %s317, %s318
      %p322 = pneg %p316
      %p323 = scmp.eq.s32.totalorder %s24, 1
      %p324 = por %p322, %p323
      %p325 = scmp.ne.s32.totalorder %s317, %s320
      %p326 = scmp.eq.s32.totalorder %s24, 0
      %p327 = por %p325, %p326
      %p328 = scmp.ne.s32.totalorder %s317, %s320
      %p329 = scmp.eq.s32.totalorder %s29, 1
      %p330 = por %p328, %p329
      %p331 = scmp.ne.s32.totalorder %s320, %s321
      %p332 = scmp.eq.s32.totalorder %s29, 0
      %p333 = por %p331, %p332
      %p334 = scmp.ne.s32.totalorder %s320, %s321
      %p335 = scmp.eq.s32.totalorder %s30, 1
      %p336 = por %p334, %p335
      %p338 = scmp.ne.s32.totalorder %s321, %s337
      %p339 = scmp.eq.s32.totalorder %s30, 0
      %p340 = por %p338, %p339
      %s341 = ssub.s32 %s32, %s39
      %p342 = scmp.eq.s32.totalorder %s341, 0
      %s344 = sadd.s32 %s343, 1
      %s345 = scalar_select %p342, %s343, %s344
      %p348 = pneg %p342
      %p349 = scmp.eq.s32.totalorder %s24, 1
      %p350 = por %p348, %p349
      %p351 = scmp.ne.s32.totalorder %s343, %s346
      %p352 = scmp.eq.s32.totalorder %s24, 0
      %p353 = por %p351, %p352
      %p354 = scmp.ne.s32.totalorder %s343, %s346
      %p355 = scmp.eq.s32.totalorder %s29, 1
      %p356 = por %p354, %p355
      %p357 = scmp.ne.s32.totalorder %s346, %s347
      %p358 = scmp.eq.s32.totalorder %s29, 0
      %p359 = por %p357, %p358
      %p360 = scmp.ne.s32.totalorder %s346, %s347
      %p361 = scmp.eq.s32.totalorder %s30, 1
      %p362 = por %p360, %p361
      %p364 = scmp.ne.s32.totalorder %s347, %s363
      %p365 = scmp.eq.s32.totalorder %s30, 0
      %p366 = por %p364, %p365
      %s367 = ssub.s32 %s32, %s39
      %p368 = scmp.eq.s32.totalorder %s367, 0
      %s370 = sadd.s32 %s369, 1
      %s371 = scalar_select %p368, %s369, %s370
      %p374 = pneg %p368
      %p375 = scmp.eq.s32.totalorder %s24, 1
      %p376 = por %p374, %p375
      %p377 = scmp.ne.s32.totalorder %s369, %s372
      %p378 = scmp.eq.s32.totalorder %s24, 0
      %p379 = por %p377, %p378
      %p380 = scmp.ne.s32.totalorder %s369, %s372
      %p381 = scmp.eq.s32.totalorder %s29, 1
      %p382 = por %p380, %p381
      %p383 = scmp.ne.s32.totalorder %s372, %s373
      %p384 = scmp.eq.s32.totalorder %s29, 0
      %p385 = por %p383, %p384
      %p386 = scmp.ne.s32.totalorder %s372, %s373
      %p387 = scmp.eq.s32.totalorder %s30, 1
      %p388 = por %p386, %p387
      %p390 = scmp.ne.s32.totalorder %s373, %s389
      %p391 = scmp.eq.s32.totalorder %s30, 0
      %p392 = por %p390, %p391
      %s393 = ssub.s32 %s31, %s43
      %p394 = scmp.eq.s32.totalorder %s393, 0
      %s396 = sadd.s32 %s395, 1
      %s397 = scalar_select %p394, %s395, %s396
      %p400 = pneg %p394
      %p401 = scmp.eq.s32.totalorder %s24, 1
      %p402 = por %p400, %p401
      %p403 = scmp.ne.s32.totalorder %s395, %s398
      %p404 = scmp.eq.s32.totalorder %s24, 0
      %p405 = por %p403, %p404
      %p406 = scmp.ne.s32.totalorder %s395, %s398
      %p407 = scmp.eq.s32.totalorder %s29, 1
      %p408 = por %p406, %p407
      %p409 = scmp.ne.s32.totalorder %s398, %s399
      %p410 = scmp.eq.s32.totalorder %s29, 0
      %p411 = por %p409, %p410
      %p412 = scmp.ne.s32.totalorder %s398, %s399
      %p413 = scmp.eq.s32.totalorder %s30, 1
      %p414 = por %p412, %p413
      %p416 = scmp.ne.s32.totalorder %s399, %s415
      %p417 = scmp.eq.s32.totalorder %s30, 0
      %p418 = por %p416, %p417
      %p419 = scmp.le.s32.totalorder 1, %s24
      %p420 = scmp.lt.s32.totalorder %s24, 3
      %p421 = pnand %p419, %p420
      %p422 = pneg %p421
      // Predicated region
      $region9: #{tpu_custom_call.1} parent=5 // pred_check
        _
      $region10: #{tpu_custom_call.1} parent=5 // pred_check_branch
        %424 = sbr.rel (%p421) target = $region12
      $region11: #{tpu_custom_call.1} parent=5 // pred_region
        %s425 = ssub.s32 %s24, 1
        // Predicated region
        $region13: #{tpu_custom_call.1} parent=11 // pred_check
          %p426 = pneg %p62
        $region14: #{tpu_custom_call.1} parent=11 // pred_check_branch
          %428 = sbr.rel (%p426) target = $region16
        $region15: #{tpu_custom_call.1} parent=11 // pred_region
          %s430 = ssub.s32 32, 32
          %431 = vsyncadd [#allocation3], %s430
          %s432 = smul.addr %s33, 32
          %s433 = scalar_lea.hbm %s0, %s432
          %s435 = sshll.u32 [#allocation2], 4
          %s436 = int_to_ptr.vmem [resolvable:$true] %s435
          %438 = dma.hbm_to_vmem [thread:$0]  %s433, 32, %s436, [#allocation3]
        $region16: #{tpu_custom_call.1} parent=11 // pred_fallthru
          _
        // Predicated region
        $region17: #{tpu_custom_call.1} parent=11 // pred_check
          %p439 = pneg %p88
        $region18: #{tpu_custom_call.1} parent=11 // pred_check_branch
          %441 = sbr.rel (%p439) target = $region20
        $region19: #{tpu_custom_call.1} parent=11 // pred_region
          %s442 = smul.u32 2, %s33
          %s444 = ssub.s32 128, 128
          %445 = vsyncadd [#allocation6], %s444
          %s446 = smul.addr %s442, 64
          %s447 = scalar_lea.hbm %s1, %s446
          %s448 = sshll.u32 [#allocation5], 4
          %s449 = int_to_ptr.vmem [resolvable:$true] %s448
          %454 = dma.hbm_to_vmem [thread:$0]  %s447, 128, %s449, [#allocation6], 64, 64, 4
        $region20: #{tpu_custom_call.1} parent=11 // pred_fallthru
          _
        // Predicated region
        $region21: #{tpu_custom_call.1} parent=11 // pred_check
          %p455 = pneg %p114
        $region22: #{tpu_custom_call.1} parent=11 // pred_check_branch
          %457 = sbr.rel (%p455) target = $region24
        $region23: #{tpu_custom_call.1} parent=11 // pred_region
          %s459 = ssub.s32 32, 32
          %460 = vsyncadd [#allocation6], %s459
          %s461 = smul.addr %s33, 32
          %s462 = scalar_lea.hbm %s2, %s461
          %s464 = sshll.u32 [#allocation7], 4
          %s465 = int_to_ptr.vmem [resolvable:$true] %s464
          %467 = dma.hbm_to_vmem [thread:$0]  %s462, 32, %s465, [#allocation6]
        $region24: #{tpu_custom_call.1} parent=11 // pred_fallthru
          _
        // Predicated region
        $region25: #{tpu_custom_call.1} parent=11 // pred_check
          %p468 = pneg %p135
        $region26: #{tpu_custom_call.1} parent=11 // pred_check_branch
          %470 = sbr.rel (%p468) target = $region28
        $region27: #{tpu_custom_call.1} parent=11 // pred_region
          %s472 = ssub.s32 256, 256
          %473 = vsyncadd [#allocation9], %s472
          %s474 = sshll.u32 [#allocation8], 4
          %s475 = int_to_ptr.vmem [resolvable:$true] %s474
          %480 = dma.hbm_to_vmem [thread:$0]  %s3, 256, %s475, [#allocation9], 64, 64, 4
        $region28: #{tpu_custom_call.1} parent=11 // pred_fallthru
          _
        // Predicated region
        $region29: #{tpu_custom_call.1} parent=11 // pred_check
          %p481 = pneg %p156
        $region30: #{tpu_custom_call.1} parent=11 // pred_check_branch
          %483 = sbr.rel (%p481) target = $region32
        $region31: #{tpu_custom_call.1} parent=11 // pred_region
          _
        $region32: #{tpu_custom_call.1} parent=11 // pred_fallthru
          _
        // Predicated region
        $region33: #{tpu_custom_call.1} parent=11 // pred_check
          %p484 = pneg %p177
        $region34: #{tpu_custom_call.1} parent=11 // pred_check_branch
          %486 = sbr.rel (%p484) target = $region36
        $region35: #{tpu_custom_call.1} parent=11 // pred_region
          %s488 = ssub.s32 16, 16
          %489 = vsyncadd [#allocation9], %s488
          %s491 = sshll.u32 [#allocation10], 4
          %s492 = int_to_ptr.vmem [resolvable:$true] %s491
          %494 = dma.hbm_to_vmem [thread:$0]  %s5, 16, %s492, [#allocation9]
        $region36: #{tpu_custom_call.1} parent=11 // pred_fallthru
          _
      $region12: #{tpu_custom_call.1} parent=5 // pred_fallthru
        _
      %p495 = scmp.lt.s32.totalorder %s24, 2
      // Predicated region
      $region37: #{tpu_custom_call.1} parent=5 // pred_check
        %p496 = pneg %p495
      $region38: #{tpu_custom_call.1} parent=5 // pred_check_branch
        %498 = sbr.rel (%p496) target = $region40
      $region39: #{tpu_custom_call.1} parent=5 // pred_region
        // Predicated region
        $region41: #{tpu_custom_call.1} parent=39 // pred_check
          %p499 = pneg %p197
        $region42: #{tpu_custom_call.1} parent=39 // pred_check_branch
          %501 = sbr.rel (%p499) target = $region44
        $region43: #{tpu_custom_call.1} parent=39 // pred_region
          %p502 = scmp.lt.s32.totalorder %s32, 1
          %s503 = scalar_select %p502, %s32, 1
          %s504 = smul.addr %s503, 2
          %s505 = smul.addr %s504, 8
          %s506 = scalar_lea.vmem %s6, %s505
        $region44: #{tpu_custom_call.1} parent=39 // pred_fallthru
          _
        // Predicated region
        $region45: #{tpu_custom_call.1} parent=39 // pred_check
          %p507 = pneg %p223
        $region46: #{tpu_custom_call.1} parent=39 // pred_check_branch
          %509 = sbr.rel (%p507) target = $region48
        $region47: #{tpu_custom_call.1} parent=39 // pred_region
          %p510 = scmp.lt.s32.totalorder %s32, 1
          %s511 = scalar_select %p510, %s32, 1
          %s512 = smul.addr %s511, 4
          %s513 = smul.addr %s512, 4
          %s514 = scalar_lea.vmem %s7, %s513
        $region48: #{tpu_custom_call.1} parent=39 // pred_fallthru
          _
        // Predicated region
        $region49: #{tpu_custom_call.1} parent=39 // pred_check
          %p515 = pneg %p249
        $region50: #{tpu_custom_call.1} parent=39 // pred_check_branch
          %517 = sbr.rel (%p515) target = $region52
        $region51: #{tpu_custom_call.1} parent=39 // pred_region
          %p518 = scmp.lt.s32.totalorder %s32, 1
          %s519 = scalar_select %p518, %s32, 1
          %s520 = smul.addr %s519, 4
          %s521 = smul.addr %s520, 4
          %s522 = scalar_lea.vmem %s8, %s521
        $region52: #{tpu_custom_call.1} parent=39 // pred_fallthru
          _
        // Predicated region
        $region53: #{tpu_custom_call.1} parent=39 // pred_check
          %p523 = pneg %p275
        $region54: #{tpu_custom_call.1} parent=39 // pred_check_branch
          %525 = sbr.rel (%p523) target = $region56
        $region55: #{tpu_custom_call.1} parent=39 // pred_region
          %p526 = scmp.lt.s32.totalorder %s32, 1
          %s527 = scalar_select %p526, %s32, 1
          %s528 = smul.addr %s527, 4
          %s529 = smul.addr %s528, 4
          %s530 = scalar_lea.vmem %s9, %s529
        $region56: #{tpu_custom_call.1} parent=39 // pred_fallthru
          _
        // Predicated region
        $region57: #{tpu_custom_call.1} parent=39 // pred_check
          %p531 = pneg %p301
        $region58: #{tpu_custom_call.1} parent=39 // pred_check_branch
          %533 = sbr.rel (%p531) target = $region60
        $region59: #{tpu_custom_call.1} parent=39 // pred_region
          %p534 = scmp.lt.s32.totalorder %s32, 1
          %s535 = scalar_select %p534, %s32, 1
          %s536 = smul.addr %s535, 4
          %s537 = smul.addr %s536, 4
          %s538 = scalar_lea.vmem %s10, %s537
        $region60: #{tpu_custom_call.1} parent=39 // pred_fallthru
          _
        // Predicated region
        $region61: #{tpu_custom_call.1} parent=39 // pred_check
          %p539 = pneg %p327
        $region62: #{tpu_custom_call.1} parent=39 // pred_check_branch
          %541 = sbr.rel (%p539) target = $region64
        $region63: #{tpu_custom_call.1} parent=39 // pred_region
          %p542 = scmp.lt.s32.totalorder %s32, 1
          %s543 = scalar_select %p542, %s32, 1
          %s544 = smul.addr %s543, 4
          %s545 = smul.addr %s544, 4
          %s546 = scalar_lea.vmem %s11, %s545
        $region64: #{tpu_custom_call.1} parent=39 // pred_fallthru
          _
        // Predicated region
        $region65: #{tpu_custom_call.1} parent=39 // pred_check
          %p547 = pneg %p353
        $region66: #{tpu_custom_call.1} parent=39 // pred_check_branch
          %549 = sbr.rel (%p547) target = $region68
        $region67: #{tpu_custom_call.1} parent=39 // pred_region
          %p550 = scmp.lt.s32.totalorder %s32, 1
          %s551 = scalar_select %p550, %s32, 1
          %s552 = scalar_lea.vmem %s12, %s551
        $region68: #{tpu_custom_call.1} parent=39 // pred_fallthru
          _
        // Predicated region
        $region69: #{tpu_custom_call.1} parent=39 // pred_check
          %p553 = pneg %p379
        $region70: #{tpu_custom_call.1} parent=39 // pred_check_branch
          %555 = sbr.rel (%p553) target = $region72
        $region71: #{tpu_custom_call.1} parent=39 // pred_region
          %p556 = scmp.lt.s32.totalorder %s32, 1
          %s557 = scalar_select %p556, %s32, 1
          %s558 = smul.addr %s557, 8
          %s559 = smul.addr %s558, 4
          %s560 = scalar_lea.vmem %s13, %s559
        $region72: #{tpu_custom_call.1} parent=39 // pred_fallthru
          _
      $region40: #{tpu_custom_call.1} parent=5 // pred_fallthru
        _
      %p561 = scmp.le.s32.totalorder 1, %s24
      %p562 = scmp.lt.s32.totalorder %s24, 3
      %p563 = pnand %p561, %p562
      %p564 = pneg %p563
      // Predicated region
      $region73: #{tpu_custom_call.1} parent=5 // pred_check
        _
      $region74: #{tpu_custom_call.1} parent=5 // pred_check_branch
        %566 = sbr.rel (%p563) target = $region76
      $region75: #{tpu_custom_call.1} parent=5 // pred_region
        %s567 = ssub.s32 %s24, 1
        // Predicated region
        $region77: #{tpu_custom_call.1} parent=75 // pred_check
          %p568 = pneg %p62
        $region78: #{tpu_custom_call.1} parent=75 // pred_check_branch
          %570 = sbr.rel (%p568) target = $region80
        $region79: #{tpu_custom_call.1} parent=75 // pred_region
          %571 = dma.done [#allocation3], 32
        $region80: #{tpu_custom_call.1} parent=75 // pred_fallthru
          _
        // Predicated region
        $region81: #{tpu_custom_call.1} parent=75 // pred_check
          %p572 = pneg %p88
        $region82: #{tpu_custom_call.1} parent=75 // pred_check_branch
          %574 = sbr.rel (%p572) target = $region84
        $region83: #{tpu_custom_call.1} parent=75 // pred_region
          %575 = dma.done [#allocation6], 128
        $region84: #{tpu_custom_call.1} parent=75 // pred_fallthru
          _
        // Predicated region
        $region85: #{tpu_custom_call.1} parent=75 // pred_check
          %p576 = pneg %p114
        $region86: #{tpu_custom_call.1} parent=75 // pred_check_branch
          %578 = sbr.rel (%p576) target = $region88
        $region87: #{tpu_custom_call.1} parent=75 // pred_region
          %579 = dma.done [#allocation6], 32
        $region88: #{tpu_custom_call.1} parent=75 // pred_fallthru
          _
        // Predicated region
        $region89: #{tpu_custom_call.1} parent=75 // pred_check
          %p580 = pneg %p135
        $region90: #{tpu_custom_call.1} parent=75 // pred_check_branch
          %582 = sbr.rel (%p580) target = $region92
        $region91: #{tpu_custom_call.1} parent=75 // pred_region
          %583 = dma.done [#allocation9], 256
        $region92: #{tpu_custom_call.1} parent=75 // pred_fallthru
          _
        // Predicated region
        $region93: #{tpu_custom_call.1} parent=75 // pred_check
          %p584 = pneg %p177
        $region94: #{tpu_custom_call.1} parent=75 // pred_check_branch
          %586 = sbr.rel (%p584) target = $region96
        $region95: #{tpu_custom_call.1} parent=75 // pred_region
          %587 = dma.done [#allocation9], 16
        $region96: #{tpu_custom_call.1} parent=75 // pred_fallthru
          _
        %p588 = pneg %p62
        %p589 = pneg %p59
        %p590 = pneg %p88
        %p591 = pneg %p85
        %p592 = pneg %p114
        %p593 = pneg %p111
        %p594 = pneg %p135
        %p595 = pneg %p132
        %p596 = pneg %p156
        %p597 = pneg %p153
        %p598 = pneg %p177
        %p599 = pneg %p174
        %p600 = scmp.lt.s32.totalorder %s34, 1
        %s601 = scalar_select %p600, %s34, 1
        %s602 = smul.addr %s601, 2
        %s603 = smul.addr %s602, 8
        %s604 = scalar_lea.vmem %s6, %s603
        %p605 = pneg %p203
        %p606 = pneg %p200
        %p607 = scmp.lt.s32.totalorder %s34, 1
        %s608 = scalar_select %p607, %s34, 1
        %s609 = smul.addr %s608, 4
        %s610 = smul.addr %s609, 4
        %s611 = scalar_lea.vmem %s7, %s610
        %p612 = pneg %p229
        %p613 = pneg %p226
        %p614 = scmp.lt.s32.totalorder %s34, 1
        %s615 = scalar_select %p614, %s34, 1
        %s616 = smul.addr %s615, 4
        %s617 = smul.addr %s616, 4
        %s618 = scalar_lea.vmem %s8, %s617
        %p619 = pneg %p255
        %p620 = pneg %p252
        %p621 = scmp.lt.s32.totalorder %s34, 1
        %s622 = scalar_select %p621, %s34, 1
        %s623 = smul.addr %s622, 4
        %s624 = smul.addr %s623, 4
        %s625 = scalar_lea.vmem %s9, %s624
        %p626 = pneg %p281
        %p627 = pneg %p278
        %p628 = scmp.lt.s32.totalorder %s34, 1
        %s629 = scalar_select %p628, %s34, 1
        %s630 = smul.addr %s629, 4
        %s631 = smul.addr %s630, 4
        %s632 = scalar_lea.vmem %s10, %s631
        %p633 = pneg %p307
        %p634 = pneg %p304
        %p635 = scmp.lt.s32.totalorder %s34, 1
        %s636 = scalar_select %p635, %s34, 1
        %s637 = smul.addr %s636, 4
        %s638 = smul.addr %s637, 4
        %s639 = scalar_lea.vmem %s11, %s638
        %p640 = pneg %p333
        %p641 = pneg %p330
        %p642 = scmp.lt.s32.totalorder %s34, 1
        %s643 = scalar_select %p642, %s34, 1
        %s644 = scalar_lea.vmem %s12, %s643
        %p645 = pneg %p359
        %p646 = pneg %p356
        %p647 = scmp.lt.s32.totalorder %s34, 1
        %s648 = scalar_select %p647, %s34, 1
        %s649 = smul.addr %s648, 8
        %s650 = smul.addr %s649, 4
        %s651 = scalar_lea.vmem %s13, %s650
        %p652 = pneg %p385
        %p653 = pneg %p382
        %p654 = pneg %p411
        %p655 = pneg %p408
        %s656 = smul.u32 2, %s33
        %p657 = scmp.lt.s32.totalorder %s34, 1
        %s658 = scalar_select %p657, %s34, 1
        %s659 = smul.addr %s658, 2
        %s660 = smul.addr %s659, 8
        %s661 = scalar_lea.vmem %s6, %s660
        %p662 = scmp.lt.s32.totalorder %s34, 1
        %s663 = scalar_select %p662, %s34, 1
        %s664 = smul.addr %s663, 4
        %s665 = smul.addr %s664, 4
        %s666 = scalar_lea.vmem %s7, %s665
        %p667 = scmp.lt.s32.totalorder %s34, 1
        %s668 = scalar_select %p667, %s34, 1
        %s669 = smul.addr %s668, 4
        %s670 = smul.addr %s669, 4
        %s671 = scalar_lea.vmem %s8, %s670
        %p672 = scmp.lt.s32.totalorder %s34, 1
        %s673 = scalar_select %p672, %s34, 1
        %s674 = smul.addr %s673, 4
        %s675 = smul.addr %s674, 4
        %s676 = scalar_lea.vmem %s9, %s675
        %p677 = scmp.lt.s32.totalorder %s34, 1
        %s678 = scalar_select %p677, %s34, 1
        %s679 = smul.addr %s678, 4
        %s680 = smul.addr %s679, 4
        %s681 = scalar_lea.vmem %s10, %s680
        %p682 = scmp.lt.s32.totalorder %s34, 1
        %s683 = scalar_select %p682, %s34, 1
        %s684 = smul.addr %s683, 4
        %s685 = smul.addr %s684, 4
        %s686 = scalar_lea.vmem %s11, %s685
        %p687 = scmp.lt.s32.totalorder %s34, 1
        %s688 = scalar_select %p687, %s34, 1
        %s689 = scalar_lea.vmem %s12, %s688
        %p690 = scmp.lt.s32.totalorder %s34, 1
        %s691 = scalar_select %p690, %s34, 1
        %s692 = smul.addr %s691, 8
        %s693 = smul.addr %s692, 4
        %s694 = scalar_lea.vmem %s13, %s693
        %p696 = scmp.eq.s32.totalorder %s34, 0
        // Predicated region
        $region97: #{tpu_custom_call.1} parent=75 // pred_check
          %p697 = pneg %p696
        $region98: #{tpu_custom_call.1} parent=75 // pred_check_branch
          %699 = sbr.rel (%p697) target = $region100
        $region99: #{tpu_custom_call.1} parent=75 // pred_region
          %v700 = vld [vmem:[#allocation2] sm:$0x3]
          %vm701 = vcmask 254976
          %702 = vst.msk [vmem:[#allocation11] sm:$0x3] %vm701, %v700
        $region100: #{tpu_custom_call.1} parent=75 // pred_fallthru
          _
        %v703 = vld [vmem:[#allocation11] sm:$0x3]
        %v704 = vld [vmem:[%s661] sm:$0xff]
        %v705 = vld [vmem:[%s661 + $0x8] sm:$0xf]
        %vm706 = vcmask 254976
        %v707 = vsel %vm706, %v703, 0.0
        %708 = vadd.xlane.f32.xlu0 %v707
        %v709 = vpop.xlane.xlu0 %708
        %v710 = vrcp.pop 32.0
        %v711 = vmul.f32 %v709, %v710
        %v712 = vsub.f32 %v703, %v711
        %v713 = vmul.f32 %v712, %v712
        %v714 = vsel %vm706, %v713, 0.0
        %715 = vadd.xlane.f32.xlu0 %v714
        %v716 = vpop.xlane.xlu0 %715
        %v717 = vmul.f32 %v716, %v710
        %v718 = vadd.f32 %v717, 1e-06
        %v719 = vrsqrt.pop %v718
        %v720 = vmul.f32 %v712, %v719
        %v721 = vlaneseq
        %v722 = vshrl.u32 %v721, 7
        %v723 = vsub.s32 0, %v722
        %v724 = vrot.slane %v704, %v723
        %v725 = vmul.f32 %v720, %v724
        %v726 = vlaneseq
        %v727 = vshrl.u32 %v726, 7
        %v728 = vsub.s32 1, %v727
        %v729 = vrot.slane %v704, %v728
        %v730 = vadd.f32 %v725, %v729
        %v731 = vpack.c.bf16 %v730, %v730
        %v732 = vld [vmem:[%s666] sm:$0xf]
        %v733 = vld [vmem:[%s666 + $0x4] sm:$0xf]
        %v734 = vld [vmem:[%s666 + $0x8] sm:$0xf]
        %v735 = vld [vmem:[%s666 + $0xc] sm:$0xf]
        %v736 = vlaneseq
        %v737 = vshrl.u32 %v736, 7
        %v738 = vsub.s32 2, %v737
        %v739 = vrot.slane %v704, %v738
        %v744 = vunpack.c.l.b16 %v732
        %v745 = vunpack.c.l.b16 %v733
        %v746 = vunpack.c.l.b16 %v734
        %v747 = vunpack.c.l.b16 %v735
        %v748 = vpack.c.b16 %v745, %v744
        %v749 = vpack.c.b16 %v747, %v746
        %vm752 = vcmask 261120
        %v754 = vsel %vm752, %v731, 0
        %756 = vmatprep.subr.bf16.mxu0 0
        %757 = vmatpush1.bf16.msra.mxu0 %v748
        %758 = vmatprep.subr.bf16.mxu0 0
        %759 = vmatpush1.bf16.msra.mxu0 %v749
        %760 = vmatprep.subr.bf16.mxu0 0
        %761 = vmatpush1.bf16.msra.mxu0 0
        %762 = vmatprep.subr.bf16.mxu0 0
        %763 = vmatpush1.bf16.msra.mxu0 0
        %764 = vmatprep.subr.bf16.mxu0 0
        %765 = vmatpush1.bf16.msra.mxu0 0
        %766 = vmatprep.subr.bf16.mxu0 0
        %767 = vmatpush1.bf16.msra.mxu0 0
        %768 = vmatprep.subr.bf16.mxu0 0
        %769 = vmatpush1.bf16.msra.mxu0 0
        %770 = vmatprep.subr.bf16.mxu0 0
        %771 = vmatpush1.bf16.msra.mxu0 0
        %772 = vmatprep.subr.bf16.mxu0 0
        %773 = vmatpush1.bf16.msra.mxu0 0
        %774 = vmatprep.subr.bf16.mxu0 0
        %775 = vmatpush1.bf16.msra.mxu0 0
        %776 = vmatprep.subr.bf16.mxu0 0
        %777 = vmatpush1.bf16.msra.mxu0 0
        %778 = vmatprep.subr.bf16.mxu0 0
        %779 = vmatpush1.bf16.msra.mxu0 0
        %780 = vmatprep.subr.bf16.mxu0 0
        %781 = vmatpush1.bf16.msra.mxu0 0
        %782 = vmatprep.subr.bf16.mxu0 0
        %783 = vmatpush1.bf16.msra.mxu0 0
        %784 = vmatprep.subr.bf16.mxu0 0
        %785 = vmatpush1.bf16.msra.mxu0 0
        %786 = vmatprep.subr.bf16.mxu0 0
        %787 = vmatpush1.bf16.msra.mxu0 0
        %788 = vmatprep.mubr.bf16.mxu0 0
        %789 = vmatmul.mubr.bf16.gmra.mrb[0].mxu0 %v754
        %v790 = vpop.f32.mrb[0].mxu0
        %v791 = vadd.f32 %v739, %v790
        %v792 = vpop.f32.mrb[0].mxu0
        %v793 = vpop.f32.mrb[0].mxu0
        %v794 = vpop.f32.mrb[0].mxu0
        %795 = vdwg.mxu0
        %v796 = vadd.f32 %v791, %v703
        %v797 = vsel %vm706, %v796, 0.0
        %798 = vadd.xlane.f32.xlu0 %v797
        %v799 = vpop.xlane.xlu0 %798
        %v800 = vmul.f32 %v799, %v710
        %v801 = vsub.f32 %v796, %v800
        %v802 = vmul.f32 %v801, %v801
        %v803 = vsel %vm706, %v802, 0.0
        %804 = vadd.xlane.f32.xlu0 %v803
        %v805 = vpop.xlane.xlu0 %804
        %v806 = vmul.f32 %v805, %v710
        %v807 = vadd.f32 %v806, 1e-06
        %v808 = vrsqrt.pop %v807
        %v809 = vmul.f32 %v801, %v808
        %v810 = vlaneseq
        %v811 = vshrl.u32 %v810, 7
        %v812 = vsub.s32 3, %v811
        %v813 = vrot.slane %v704, %v812
        %v814 = vmul.f32 %v809, %v813
        %v815 = vlaneseq
        %v816 = vshrl.u32 %v815, 7
        %v817 = vsub.s32 4, %v816
        %v818 = vrot.slane %v704, %v817
        %v819 = vadd.f32 %v814, %v818
        %v820 = vpack.c.bf16 %v819, %v819
        %v821 = vld [vmem:[%s671] sm:$0xf]
        %v822 = vld [vmem:[%s671 + $0x4] sm:$0xf]
        %v823 = vld [vmem:[%s671 + $0x8] sm:$0xf]
        %v824 = vld [vmem:[%s671 + $0xc] sm:$0xf]
        %v825 = vlaneseq
        %v826 = vshrl.u32 %v825, 7
        %v827 = vsub.s32 5, %v826
        %v828 = vrot.slane %v704, %v827
        %v833 = vunpack.c.l.b16 %v821
        %v834 = vunpack.c.l.b16 %v822
        %v835 = vunpack.c.l.b16 %v823
        %v836 = vunpack.c.l.b16 %v824
        %v837 = vpack.c.b16 %v834, %v833
        %v838 = vpack.c.b16 %v836, %v835
        %v842 = vsel %vm752, %v820, 0
        %844 = vmatprep.subr.bf16.mxu0 0
        %845 = vmatpush1.bf16.msra.mxu0 %v837
        %846 = vmatprep.subr.bf16.mxu0 0
        %847 = vmatpush1.bf16.msra.mxu0 %v838
        %848 = vmatprep.subr.bf16.mxu0 0
        %849 = vmatpush1.bf16.msra.mxu0 0
        %850 = vmatprep.subr.bf16.mxu0 0
        %851 = vmatpush1.bf16.msra.mxu0 0
        %852 = vmatprep.subr.bf16.mxu0 0
        %853 = vmatpush1.bf16.msra.mxu0 0
        %854 = vmatprep.subr.bf16.mxu0 0
        %855 = vmatpush1.bf16.msra.mxu0 0
        %856 = vmatprep.subr.bf16.mxu0 0
        %857 = vmatpush1.bf16.msra.mxu0 0
        %858 = vmatprep.subr.bf16.mxu0 0
        %859 = vmatpush1.bf16.msra.mxu0 0
        %860 = vmatprep.subr.bf16.mxu0 0
        %861 = vmatpush1.bf16.msra.mxu0 0
        %862 = vmatprep.subr.bf16.mxu0 0
        %863 = vmatpush1.bf16.msra.mxu0 0
        %864 = vmatprep.subr.bf16.mxu0 0
        %865 = vmatpush1.bf16.msra.mxu0 0
        %866 = vmatprep.subr.bf16.mxu0 0
        %867 = vmatpush1.bf16.msra.mxu0 0
        %868 = vmatprep.subr.bf16.mxu0 0
        %869 = vmatpush1.bf16.msra.mxu0 0
        %870 = vmatprep.subr.bf16.mxu0 0
        %871 = vmatpush1.bf16.msra.mxu0 0
        %872 = vmatprep.subr.bf16.mxu0 0
        %873 = vmatpush1.bf16.msra.mxu0 0
        %874 = vmatprep.subr.bf16.mxu0 0
        %875 = vmatpush1.bf16.msra.mxu0 0
        %876 = vmatprep.mubr.bf16.mxu0 0
        %877 = vmatmul.mubr.bf16.gmra.mrb[0].mxu0 %v842
        %v878 = vpop.f32.mrb[0].mxu0
        %v879 = vadd.f32 %v828, %v878
        %v880 = vpop.f32.mrb[0].mxu0
        %v881 = vpop.f32.mrb[0].mxu0
        %v882 = vpop.f32.mrb[0].mxu0
        %883 = vdwg.mxu0
        %v884 = vpack.c.bf16 %v879, %v879
        %v885 = vld [vmem:[#allocation5] sm:$0xf]
        %v886 = vld [vmem:[#allocation5 + $0x4] sm:$0xf]
        %v887 = vld [vmem:[%s676] sm:$0xf]
        %v888 = vld [vmem:[%s676 + $0x4] sm:$0xf]
        %v889 = vld [vmem:[%s676 + $0x8] sm:$0xf]
        %v890 = vld [vmem:[%s676 + $0xc] sm:$0xf]
        %v893 = vunpack.c.l.b16 %v885
        %v894 = vunpack.c.l.b16 %v886
        %v895 = vpack.c.b16 %v894, %v893
        %v900 = vunpack.c.l.b16 %v887
        %v901 = vunpack.c.l.b16 %v888
        %v902 = vunpack.c.l.b16 %v889
        %v903 = vunpack.c.l.b16 %v890
        %v904 = vpack.c.b16 %v901, %v900
        %v905 = vpack.c.b16 %v903, %v902
        %v909 = vsel %vm752, %v895, 0
        %911 = vmatprep.subr.bf16.mxu0 0
        %912 = vmatpush1.bf16.msra.mxu0 %v904
        %913 = vmatprep.subr.bf16.mxu0 0
        %914 = vmatpush1.bf16.msra.mxu0 %v905
        %915 = vmatprep.subr.bf16.mxu0 0
        %916 = vmatpush1.bf16.msra.mxu0 0
        %917 = vmatprep.subr.bf16.mxu0 0
        %918 = vmatpush1.bf16.msra.mxu0 0
        %919 = vmatprep.subr.bf16.mxu0 0
        %920 = vmatpush1.bf16.msra.mxu0 0
        %921 = vmatprep.subr.bf16.mxu0 0
        %922 = vmatpush1.bf16.msra.mxu0 0
        %923 = vmatprep.subr.bf16.mxu0 0
        %924 = vmatpush1.bf16.msra.mxu0 0
        %925 = vmatprep.subr.bf16.mxu0 0
        %926 = vmatpush1.bf16.msra.mxu0 0
        %927 = vmatprep.subr.bf16.mxu0 0
        %928 = vmatpush1.bf16.msra.mxu0 0
        %929 = vmatprep.subr.bf16.mxu0 0
        %930 = vmatpush1.bf16.msra.mxu0 0
        %931 = vmatprep.subr.bf16.mxu0 0
        %932 = vmatpush1.bf16.msra.mxu0 0
        %933 = vmatprep.subr.bf16.mxu0 0
        %934 = vmatpush1.bf16.msra.mxu0 0
        %935 = vmatprep.subr.bf16.mxu0 0
        %936 = vmatpush1.bf16.msra.mxu0 0
        %937 = vmatprep.subr.bf16.mxu0 0
        %938 = vmatpush1.bf16.msra.mxu0 0
        %939 = vmatprep.subr.bf16.mxu0 0
        %940 = vmatpush1.bf16.msra.mxu0 0
        %941 = vmatprep.subr.bf16.mxu0 0
        %942 = vmatpush1.bf16.msra.mxu0 0
        %943 = vmatprep.mubr.bf16.mxu0 0
        %944 = vmatmul.mubr.bf16.gmra.mrb[0].mxu0 %v909
        %v945 = vpop.f32.mrb[0].mxu0
        %v946 = vadd.f32 0.0, %v945
        %v947 = vpop.f32.mrb[0].mxu0
        %v948 = vpop.f32.mrb[0].mxu0
        %v949 = vadd.f32 0.0, %v948
        %v950 = vpop.f32.mrb[0].mxu0
        %951 = vdwg.mxu0
        %v952 = vlaneseq
        %v953 = vshrl.u32 %v952, 7
        %v954 = vsub.s32 6, %v953
        %v955 = vrot.slane %v704, %v954
        %v956 = vadd.f32 %v946, %v955
        %v957 = vadd.f32 %v949, %v955
        %v958 = vpack.c.bf16 %v957, %v956
        %v960 = vunpack.c.l.b16 %v958
        %v961 = vunpack.c.h.b16 %v958
        %v962 = vpack.c.b16 %v960, %v960
        %v963 = vpack.c.b16 %v961, %v961
        %v966 = vlaneseq
        %v967 = vshrl.u32 %v966, 7
        %v968 = vsub.s32 7, %v967
        %v969 = vrot.slane %v704, %v968
        %971 = vrot.lane.b32.xlu0 %v969, 32
        %v972 = vpop.permute.xlu0 %971
        %v974 = vadd.f32 %v946, %v972
        %v975 = vadd.f32 %v949, %v972
        %v976 = vpack.c.bf16 %v975, %v974
        %v978 = vunpack.c.l.b16 %v976
        %v979 = vunpack.c.h.b16 %v976
        %v982 = vunpack.c.l.s4 1966171168
        %v983 = vunpack.c.0.s8 %v982
        %v984 = vlaneseq
        %v985 = vshrl.u32 %v984, 7
        %v986 = vsub.s32 %v983, %v985
        %v987 = vrot.slane %v884, %v986
        %v989 = vunpack.c.l.s4 1966171168
        %v990 = vunpack.c.0.s8 %v989
        %v991 = vlaneseq
        %v992 = vshrl.u32 %v991, 7
        %v993 = vsub.s32 %v990, %v992
        %v994 = vrot.slane %v987, %v993
        %v995 = vunpack.i.l.s16 %v994
        %v996 = vunpack.i.h.s16 %v994
        %v997 = vpack.i.b16 %v995, %v995
        %v998 = vpack.i.b16 %v996, %v996
        %v999 = vlaneseq
        %v1000 = vshrl.u32 %v999, 7
        %v1001 = vsub.s32 0, %v1000
        %v1002 = vrot.slane %v997, %v1001
        %v1003 = vlaneseq
        %v1004 = vshrl.u32 %v1003, 7
        %v1005 = vsub.s32 0, %v1004
        %v1006 = vrot.slane %v998, %v1005
        %v1008 = vpack.i.b16 %v1002, %v1002
        %v1010 = vlaneseq
        %v1011 = vshrl.u32 %v1010, 7
        %v1012 = vsub.s32 0, %v1011
        %v1013 = vrot.slane %v1008, %v1012
        %v1015 = vpack.i.b16 %v1006, %v1006
        %v1017 = vlaneseq
        %v1018 = vshrl.u32 %v1017, 7
        %v1019 = vsub.s32 0, %v1018
        %v1020 = vrot.slane %v1015, %v1019
        %v1021 = vmul.bf16 %v1013, %v962
        %v1022 = vmul.bf16 %v1020, %v963
        %v1023 = vld [vmem:[#allocation8] sm:$0xf]
        %v1024 = vld [vmem:[#allocation8 + $0x4] sm:$0xf]
        %v1025 = vld [vmem:[#allocation8 + $0x8] sm:$0xf]
        %v1026 = vld [vmem:[#allocation8 + $0xc] sm:$0xf]
        %v1029 = vunpack.c.l.b16 %v1021
        %v1030 = vunpack.c.l.b16 %v1022
        %v1031 = vpack.c.b16 %v1030, %v1029
        %v1036 = vunpack.c.l.b16 %v1023
        %v1037 = vunpack.c.l.b16 %v1024
        %v1038 = vunpack.c.l.b16 %v1025
        %v1039 = vunpack.c.l.b16 %v1026
        %v1040 = vpack.c.b16 %v1037, %v1036
        %v1041 = vpack.c.b16 %v1039, %v1038
        %v1045 = vsel %vm752, %v1031, 0
        %1047 = vmatprep.subr.bf16.mxu0 0
        %1048 = vmatpush1.bf16.msra.mxu0 %v1040
        %1049 = vmatprep.subr.bf16.mxu0 0
        %1050 = vmatpush1.bf16.msra.mxu0 %v1041
        %1051 = vmatprep.subr.bf16.mxu0 0
        %1052 = vmatpush1.bf16.msra.mxu0 0
        %1053 = vmatprep.subr.bf16.mxu0 0
        %1054 = vmatpush1.bf16.msra.mxu0 0
        %1055 = vmatprep.subr.bf16.mxu0 0
        %1056 = vmatpush1.bf16.msra.mxu0 0
        %1057 = vmatprep.subr.bf16.mxu0 0
        %1058 = vmatpush1.bf16.msra.mxu0 0
        %1059 = vmatprep.subr.bf16.mxu0 0
        %1060 = vmatpush1.bf16.msra.mxu0 0
        %1061 = vmatprep.subr.bf16.mxu0 0
        %1062 = vmatpush1.bf16.msra.mxu0 0
        %1063 = vmatprep.subr.bf16.mxu0 0
        %1064 = vmatpush1.bf16.msra.mxu0 0
        %1065 = vmatprep.subr.bf16.mxu0 0
        %1066 = vmatpush1.bf16.msra.mxu0 0
        %1067 = vmatprep.subr.bf16.mxu0 0
        %1068 = vmatpush1.bf16.msra.mxu0 0
        %1069 = vmatprep.subr.bf16.mxu0 0
        %1070 = vmatpush1.bf16.msra.mxu0 0
        %1071 = vmatprep.subr.bf16.mxu0 0
        %1072 = vmatpush1.bf16.msra.mxu0 0
        %1073 = vmatprep.subr.bf16.mxu0 0
        %1074 = vmatpush1.bf16.msra.mxu0 0
        %1075 = vmatprep.subr.bf16.mxu0 0
        %1076 = vmatpush1.bf16.msra.mxu0 0
        %1077 = vmatprep.subr.bf16.mxu0 0
        %1078 = vmatpush1.bf16.msra.mxu0 0
        %1079 = vmatprep.mubr.bf16.mxu0 0
        %1080 = vmatmul.mubr.bf16.gmra.mrb[0].mxu0 %v1045
        %v1081 = vpop.f32.mrb[0].mxu0
        %v1082 = vadd.f32 0.0, %v1081
        %v1083 = vpop.f32.mrb[0].mxu0
        %v1084 = vpop.f32.mrb[0].mxu0
        %v1085 = vadd.f32 0.0, %v1084
        %v1086 = vpop.f32.mrb[0].mxu0
        %1087 = vdwg.mxu0
        %v1088 = vld [vmem:[#allocation7] sm:$0x3]
        %v1089 = vlaneseq
        %v1090 = vshrl.u32 %v1089, 7
        %v1091 = vsub.s32 0, %v1090
        %v1092 = vrot.slane %v1088, %v1091
        %1094 = vbcast.lane.b32.xlu0 %v1092, 256
        %v1095 = vpop.permute.xlu0 %1094
        %v1096 = vlaneseq
        %v1097 = vshrl.u32 %v1096, 7
        %v1098 = vsub.s32 1, %v1097
        %v1099 = vrot.slane %v1088, %v1098
        %1101 = vbcast.lane.b32.xlu0 %v1099, 256
        %v1102 = vpop.permute.xlu0 %1101
        %v1103 = vadd.f32 %v1082, %v1095
        %v1104 = vadd.f32 %v1085, %v1102
        %v1105 = vsel %vm752, %v1103, -inf
        %v1106 = vrot.slane %v1105, 4
        %v1107 = vmax.f32 %v1105, %v1106
        %v1108 = vrot.slane %v1107, 2
        %v1109 = vmax.f32 %v1107, %v1108
        %v1110 = vrot.slane %v1109, 1
        %v1111 = vmax.f32 %v1109, %v1110
        %v1112 = vsel %vm752, %v1104, -inf
        %v1113 = vrot.slane %v1112, 4
        %v1114 = vmax.f32 %v1112, %v1113
        %v1115 = vrot.slane %v1114, 2
        %v1116 = vmax.f32 %v1114, %v1115
        %v1117 = vrot.slane %v1116, 1
        %v1118 = vmax.f32 %v1116, %v1117
        %v1119 = vsub.f32 %v1103, %v1111
        %v1120 = vsub.f32 %v1104, %v1118
        %v1121 = vmul.f32 %v1119, 1.442695
        %v1122 = vpow.pop %v1121
        %v1123 = vmul.f32 %v1120, 1.442695
        %v1124 = vpow.pop %v1123
        %v1125 = vsel %vm752, %v1122, 0.0
        %v1126 = vrot.slane %v1125, 4
        %v1127 = vadd.f32 %v1125, %v1126
        %v1128 = vrot.slane %v1127, 2
        %v1129 = vadd.f32 %v1127, %v1128
        %v1130 = vrot.slane %v1129, 1
        %v1131 = vadd.f32 %v1129, %v1130
        %v1132 = vsel %vm752, %v1124, 0.0
        %v1133 = vrot.slane %v1132, 4
        %v1134 = vadd.f32 %v1132, %v1133
        %v1135 = vrot.slane %v1134, 2
        %v1136 = vadd.f32 %v1134, %v1135
        %v1137 = vrot.slane %v1136, 1
        %v1138 = vadd.f32 %v1136, %v1137
        %v1139 = vrcp.pop %v1131
        %v1140 = vrcp.pop %v1138
        %v1141 = vmul.f32 %v1122, %v1139
        %v1142 = vmul.f32 %v1124, %v1140
        %v1143 = vpack.c.bf16 %v1141, %v1141
        %v1144 = vpack.c.bf16 %v1142, %v1142
        %v1145 = vpack.c.b16 %v978, %v978
        %v1146 = vpack.c.b16 %v979, %v979
        %1147 = vrot.lane.b32.xlu0 %v1145, 96
        %v1148 = vpop.permute.xlu0 %1147
        %1149 = vrot.lane.b32.xlu0 %v1146, 96
        %v1150 = vpop.permute.xlu0 %1149
        %v1153 = vmul.bf16 %v1143, %v1148
        %v1154 = vmul.bf16 %v1144, %v1150
        %v1155 = vunpack.c.l.bf16 %v1153
        %v1156 = vunpack.c.l.bf16 %v1154
        %v1157 = vsel %vm752, %v1155, 0.0
        %v1158 = vrot.slane %v1157, 4
        %v1159 = vadd.f32 %v1157, %v1158
        %v1160 = vrot.slane %v1159, 2
        %v1161 = vadd.f32 %v1159, %v1160
        %v1162 = vrot.slane %v1161, 1
        %v1163 = vadd.f32 %v1161, %v1162
        %v1164 = vsel %vm752, %v1156, 0.0
        %v1165 = vrot.slane %v1164, 4
        %v1166 = vadd.f32 %v1164, %v1165
        %v1167 = vrot.slane %v1166, 2
        %v1168 = vadd.f32 %v1166, %v1167
        %v1169 = vrot.slane %v1168, 1
        %v1170 = vadd.f32 %v1168, %v1169
        %v1171 = vpack.c.bf16 %v1163, %v1163
        %v1172 = vpack.c.bf16 %v1170, %v1170
        %v1173 = vld [vmem:[%s681] sm:$0xf]
        %v1174 = vld [vmem:[%s681 + $0x4] sm:$0xf]
        %v1175 = vld [vmem:[%s681 + $0x8] sm:$0xf]
        %v1176 = vld [vmem:[%s681 + $0xc] sm:$0xf]
        %v1177 = vlaneseq
        %v1178 = vshrl.u32 %v1177, 7
        %v1179 = vsub.s32 0, %v1178
        %v1180 = vrot.slane %v705, %v1179
        %v1183 = vunpack.c.l.b16 %v1171
        %v1184 = vunpack.c.l.b16 %v1172
        %vm1185 = vcmask 1041409
        %v1186 = vsel %vm1185, %v1184, %v1183
        %v1187 = vpack.c.b16 %v1186, %v1186
        %v1192 = vunpack.c.l.b16 %v1173
        %v1193 = vunpack.c.l.b16 %v1174
        %v1194 = vunpack.c.l.b16 %v1175
        %v1195 = vunpack.c.l.b16 %v1176
        %v1196 = vpack.c.b16 %v1193, %v1192
        %v1197 = vpack.c.b16 %v1195, %v1194
        %v1201 = vsel %vm752, %v1187, 0
        %1203 = vmatprep.subr.bf16.mxu0 0
        %1204 = vmatpush1.bf16.msra.mxu0 %v1196
        %1205 = vmatprep.subr.bf16.mxu0 0
        %1206 = vmatpush1.bf16.msra.mxu0 %v1197
        %1207 = vmatprep.subr.bf16.mxu0 0
        %1208 = vmatpush1.bf16.msra.mxu0 0
        %1209 = vmatprep.subr.bf16.mxu0 0
        %1210 = vmatpush1.bf16.msra.mxu0 0
        %1211 = vmatprep.subr.bf16.mxu0 0
        %1212 = vmatpush1.bf16.msra.mxu0 0
        %1213 = vmatprep.subr.bf16.mxu0 0
        %1214 = vmatpush1.bf16.msra.mxu0 0
        %1215 = vmatprep.subr.bf16.mxu0 0
        %1216 = vmatpush1.bf16.msra.mxu0 0
        %1217 = vmatprep.subr.bf16.mxu0 0
        %1218 = vmatpush1.bf16.msra.mxu0 0
        %1219 = vmatprep.subr.bf16.mxu0 0
        %1220 = vmatpush1.bf16.msra.mxu0 0
        %1221 = vmatprep.subr.bf16.mxu0 0
        %1222 = vmatpush1.bf16.msra.mxu0 0
        %1223 = vmatprep.subr.bf16.mxu0 0
        %1224 = vmatpush1.bf16.msra.mxu0 0
        %1225 = vmatprep.subr.bf16.mxu0 0
        %1226 = vmatpush1.bf16.msra.mxu0 0
        %1227 = vmatprep.subr.bf16.mxu0 0
        %1228 = vmatpush1.bf16.msra.mxu0 0
        %1229 = vmatprep.subr.bf16.mxu0 0
        %1230 = vmatpush1.bf16.msra.mxu0 0
        %1231 = vmatprep.subr.bf16.mxu0 0
        %1232 = vmatpush1.bf16.msra.mxu0 0
        %1233 = vmatprep.subr.bf16.mxu0 0
        %1234 = vmatpush1.bf16.msra.mxu0 0
        %1235 = vmatprep.mubr.bf16.mxu0 0
        %1236 = vmatmul.mubr.bf16.gmra.mrb[0].mxu0 %v1201
        %v1237 = vpop.f32.mrb[0].mxu0
        %v1238 = vadd.f32 %v1180, %v1237
        %v1239 = vpop.f32.mrb[0].mxu0
        %v1240 = vpop.f32.mrb[0].mxu0
        %v1241 = vpop.f32.mrb[0].mxu0
        %1242 = vdwg.mxu0
        %v1243 = vadd.f32 %v1238, %v796
        %v1244 = vsel %vm706, %v1243, 0.0
        %1245 = vadd.xlane.f32.xlu0 %v1244
        %v1246 = vpop.xlane.xlu0 %1245
        %v1247 = vmul.f32 %v1246, %v710
        %v1248 = vsub.f32 %v1243, %v1247
        %v1249 = vmul.f32 %v1248, %v1248
        %v1250 = vsel %vm706, %v1249, 0.0
        %1251 = vadd.xlane.f32.xlu0 %v1250
        %v1252 = vpop.xlane.xlu0 %1251
        %v1253 = vmul.f32 %v1252, %v710
        %v1254 = vadd.f32 %v1253, 1e-06
        %v1255 = vrsqrt.pop %v1254
        %v1256 = vmul.f32 %v1248, %v1255
        %v1257 = vlaneseq
        %v1258 = vshrl.u32 %v1257, 7
        %v1259 = vsub.s32 1, %v1258
        %v1260 = vrot.slane %v705, %v1259
        %v1261 = vmul.f32 %v1256, %v1260
        %v1262 = vlaneseq
        %v1263 = vshrl.u32 %v1262, 7
        %v1264 = vsub.s32 2, %v1263
        %v1265 = vrot.slane %v705, %v1264
        %v1266 = vadd.f32 %v1261, %v1265
        %v1267 = vpack.c.bf16 %v1266, %v1266
        %v1268 = vld [vmem:[%s686] sm:$0xf]
        %v1269 = vld [vmem:[%s686 + $0x4] sm:$0xf]
        %v1270 = vld [vmem:[%s686 + $0x8] sm:$0xf]
        %v1271 = vld [vmem:[%s686 + $0xc] sm:$0xf]
        %v1272 = vld [vmem:[%s689] sm:$0x1]
        %v1274 = vlaneseq
        %v1275 = vshrl.u32 %v1274, 7
        %v1276 = vsub.s32 0, %v1275
        %v1277 = vrot.slane %v1272, %v1276
        %v1283 = vunpack.c.l.b16 %v1268
        %v1284 = vunpack.c.l.b16 %v1269
        %v1285 = vunpack.c.l.b16 %v1270
        %v1286 = vunpack.c.l.b16 %v1271
        %v1287 = vpack.c.b16 %v1284, %v1283
        %v1288 = vpack.c.b16 %v1286, %v1285
        %v1292 = vsel %vm752, %v1267, 0
        %1294 = vmatprep.subr.bf16.mxu0 0
        %1295 = vmatpush1.bf16.msra.mxu0 %v1287
        %1296 = vmatprep.subr.bf16.mxu0 0
        %1297 = vmatpush1.bf16.msra.mxu0 %v1288
        %1298 = vmatprep.subr.bf16.mxu0 0
        %1299 = vmatpush1.bf16.msra.mxu0 0
        %1300 = vmatprep.subr.bf16.mxu0 0
        %1301 = vmatpush1.bf16.msra.mxu0 0
        %1302 = vmatprep.subr.bf16.mxu0 0
        %1303 = vmatpush1.bf16.msra.mxu0 0
        %1304 = vmatprep.subr.bf16.mxu0 0
        %1305 = vmatpush1.bf16.msra.mxu0 0
        %1306 = vmatprep.subr.bf16.mxu0 0
        %1307 = vmatpush1.bf16.msra.mxu0 0
        %1308 = vmatprep.subr.bf16.mxu0 0
        %1309 = vmatpush1.bf16.msra.mxu0 0
        %1310 = vmatprep.subr.bf16.mxu0 0
        %1311 = vmatpush1.bf16.msra.mxu0 0
        %1312 = vmatprep.subr.bf16.mxu0 0
        %1313 = vmatpush1.bf16.msra.mxu0 0
        %1314 = vmatprep.subr.bf16.mxu0 0
        %1315 = vmatpush1.bf16.msra.mxu0 0
        %1316 = vmatprep.subr.bf16.mxu0 0
        %1317 = vmatpush1.bf16.msra.mxu0 0
        %1318 = vmatprep.subr.bf16.mxu0 0
        %1319 = vmatpush1.bf16.msra.mxu0 0
        %1320 = vmatprep.subr.bf16.mxu0 0
        %1321 = vmatpush1.bf16.msra.mxu0 0
        %1322 = vmatprep.subr.bf16.mxu0 0
        %1323 = vmatpush1.bf16.msra.mxu0 0
        %1324 = vmatprep.subr.bf16.mxu0 0
        %1325 = vmatpush1.bf16.msra.mxu0 0
        %1326 = vmatprep.mubr.bf16.mxu0 0
        %1327 = vmatmul.mubr.bf16.gmra.mrb[0].mxu0 %v1292
        %v1328 = vpop.f32.mrb[0].mxu0
        %v1329 = vadd.f32 %v1277, %v1328
        %v1330 = vpop.f32.mrb[0].mxu0
        %v1331 = vpop.f32.mrb[0].mxu0
        %v1332 = vpop.f32.mrb[0].mxu0
        %1333 = vdwg.mxu0
        %v1334 = vmul.f32 %v1329, 0.5
        %v1335 = vmul.f32 %v1329, 0.044715
        %v1336 = vmul.f32 %v1335, %v1329
        %v1337 = vmul.f32 %v1336, %v1329
        %v1338 = vadd.f32 %v1329, %v1337
        %v1339 = vmul.f32 %v1338, 0.7978846
        %v1340 = vtanh.pop %v1339
        %v1341 = vadd.f32 %v1340, 1.0
        %v1342 = vmul.f32 %v1334, %v1341
        %v1343 = vpack.c.bf16 %v1342, %v1342
        %v1344 = vld [vmem:[%s694] sm:$0xf]
        %v1345 = vld [vmem:[%s694 + $0x4] sm:$0xf]
        %v1346 = vld [vmem:[%s694 + $0x8] sm:$0xf]
        %v1347 = vld [vmem:[%s694 + $0xc] sm:$0xf]
        %v1348 = vld [vmem:[%s694 + $0x10] sm:$0xf]
        %v1349 = vld [vmem:[%s694 + $0x14] sm:$0xf]
        %v1350 = vld [vmem:[%s694 + $0x18] sm:$0xf]
        %v1351 = vld [vmem:[%s694 + $0x1c] sm:$0xf]
        %v1352 = vlaneseq
        %v1353 = vshrl.u32 %v1352, 7
        %v1354 = vsub.s32 3, %v1353
        %v1355 = vrot.slane %v705, %v1354
        %v1364 = vunpack.c.l.b16 %v1344
        %v1365 = vunpack.c.l.b16 %v1345
        %v1366 = vunpack.c.l.b16 %v1346
        %v1367 = vunpack.c.l.b16 %v1347
        %v1368 = vunpack.c.l.b16 %v1348
        %v1369 = vunpack.c.l.b16 %v1349
        %v1370 = vunpack.c.l.b16 %v1350
        %v1371 = vunpack.c.l.b16 %v1351
        %v1372 = vpack.c.b16 %v1365, %v1364
        %v1373 = vpack.c.b16 %v1367, %v1366
        %v1374 = vpack.c.b16 %v1369, %v1368
        %v1375 = vpack.c.b16 %v1371, %v1370
        %vm1380 = vcmask 523264
        %v1382 = vsel %vm1380, %v1343, 0
        %1384 = vmatprep.subr.bf16.mxu0 0
        %1385 = vmatpush1.bf16.msra.mxu0 %v1372
        %1386 = vmatprep.subr.bf16.mxu0 0
        %1387 = vmatpush1.bf16.msra.mxu0 %v1373
        %1388 = vmatprep.subr.bf16.mxu0 0
        %1389 = vmatpush1.bf16.msra.mxu0 %v1374
        %1390 = vmatprep.subr.bf16.mxu0 0
        %1391 = vmatpush1.bf16.msra.mxu0 %v1375
        %1392 = vmatprep.subr.bf16.mxu0 0
        %1393 = vmatpush1.bf16.msra.mxu0 0
        %1394 = vmatprep.subr.bf16.mxu0 0
        %1395 = vmatpush1.bf16.msra.mxu0 0
        %1396 = vmatprep.subr.bf16.mxu0 0
        %1397 = vmatpush1.bf16.msra.mxu0 0
        %1398 = vmatprep.subr.bf16.mxu0 0
        %1399 = vmatpush1.bf16.msra.mxu0 0
        %1400 = vmatprep.subr.bf16.mxu0 0
        %1401 = vmatpush1.bf16.msra.mxu0 0
        %1402 = vmatprep.subr.bf16.mxu0 0
        %1403 = vmatpush1.bf16.msra.mxu0 0
        %1404 = vmatprep.subr.bf16.mxu0 0
        %1405 = vmatpush1.bf16.msra.mxu0 0
        %1406 = vmatprep.subr.bf16.mxu0 0
        %1407 = vmatpush1.bf16.msra.mxu0 0
        %1408 = vmatprep.subr.bf16.mxu0 0
        %1409 = vmatpush1.bf16.msra.mxu0 0
        %1410 = vmatprep.subr.bf16.mxu0 0
        %1411 = vmatpush1.bf16.msra.mxu0 0
        %1412 = vmatprep.subr.bf16.mxu0 0
        %1413 = vmatpush1.bf16.msra.mxu0 0
        %1414 = vmatprep.subr.bf16.mxu0 0
        %1415 = vmatpush1.bf16.msra.mxu0 0
        %1416 = vmatprep.mubr.bf16.mxu0 0
        %1417 = vmatmul.mubr.bf16.gmra.mrb[0].mxu0 %v1382
        %v1418 = vpop.f32.mrb[0].mxu0
        %v1419 = vadd.f32 %v1355, %v1418
        %v1420 = vpop.f32.mrb[0].mxu0
        %v1421 = vpop.f32.mrb[0].mxu0
        %v1422 = vpop.f32.mrb[0].mxu0
        %1423 = vdwg.mxu0
        %v1424 = vadd.f32 %v1419, %v1243
        %1425 = vst.msk [vmem:[#allocation11] sm:$0x3] %vm706, %v1424
        %p1426 = scmp.eq.s32.totalorder %s34, 1
        // Predicated region
        $region101: #{tpu_custom_call.1} parent=75 // pred_check
          %p1427 = pneg %p1426
        $region102: #{tpu_custom_call.1} parent=75 // pred_check_branch
          %1429 = sbr.rel (%p1427) target = $region104
        $region103: #{tpu_custom_call.1} parent=75 // pred_region
          %v1430 = vld [vmem:[%s4] sm:$0x1]
          %v1431 = vld [vmem:[#allocation10] sm:$0x1]
          %v1432 = vsel %vm706, %v1424, 0.0
          %1433 = vadd.xlane.f32.xlu0 %v1432
          %v1434 = vpop.xlane.xlu0 %1433
          %v1435 = vmul.f32 %v1434, %v710
          %v1436 = vsub.f32 %v1424, %v1435
          %v1437 = vmul.f32 %v1436, %v1436
          %v1438 = vsel %vm706, %v1437, 0.0
          %1439 = vadd.xlane.f32.xlu0 %v1438
          %v1440 = vpop.xlane.xlu0 %1439
          %v1441 = vmul.f32 %v1440, %v710
          %v1442 = vadd.f32 %v1441, 1e-06
          %v1443 = vrsqrt.pop %v1442
          %v1444 = vmul.f32 %v1436, %v1443
          %v1446 = vlaneseq
          %v1447 = vshrl.u32 %v1446, 7
          %v1448 = vsub.s32 0, %v1447
          %v1449 = vrot.slane %v1430, %v1448
          %v1451 = vmul.f32 %v1444, %v1449
          %v1453 = vlaneseq
          %v1454 = vshrl.u32 %v1453, 7
          %v1455 = vsub.s32 0, %v1454
          %v1456 = vrot.slane %v1431, %v1455
          %v1458 = vadd.f32 %v1451, %v1456
          %1459 = vst.msk [vmem:[#allocation11] sm:$0x3] %vm706, %v1458
        $region104: #{tpu_custom_call.1} parent=75 // pred_fallthru
          _
        // Predicated region
        $region105: #{tpu_custom_call.1} parent=75 // pred_check
          %p1460 = pneg %p408
        $region106: #{tpu_custom_call.1} parent=75 // pred_check_branch
          %1462 = sbr.rel (%p1460) target = $region108
        $region107: #{tpu_custom_call.1} parent=75 // pred_region
          %s1464 = ssub.s32 32, 32
          %1465 = vsyncadd [#allocation4], %s1464
          %s1466 = smul.addr %s33, 32
          %s1467 = scalar_lea.hbm %s14, %s1466
          %s1469 = sshll.u32 [#allocation11], 4
          %s1470 = int_to_ptr.vmem [resolvable:$true] %s1469
          %1472 = dma.vmem_to_hbm [thread:$0]  %s1470, 32, %s1467, [#allocation4]
        $region108: #{tpu_custom_call.1} parent=75 // pred_fallthru
          _
        // Predicated region
        $region109: #{tpu_custom_call.1} parent=75 // pred_check
          %p1473 = pneg %p408
        $region110: #{tpu_custom_call.1} parent=75 // pred_check_branch
          %1475 = sbr.rel (%p1473) target = $region112
        $region111: #{tpu_custom_call.1} parent=75 // pred_region
          %1476 = dma.done [#allocation4], 32
        $region112: #{tpu_custom_call.1} parent=75 // pred_fallthru
          _
      $region76: #{tpu_custom_call.1} parent=5 // pred_fallthru
        _
      %p1477 = scmp.le.s32.totalorder 2, %s24
      // Predicated region
      $region113: #{tpu_custom_call.1} parent=5 // pred_check
        %p1478 = pneg %p1477
      $region114: #{tpu_custom_call.1} parent=5 // pred_check_branch
        %1480 = sbr.rel (%p1478) target = $region116
      $region115: #{tpu_custom_call.1} parent=5 // pred_region
        %s1481 = ssub.s32 %s24, 2
      $region116: #{tpu_custom_call.1} parent=5 // pred_fallthru
        _
    $region6: #{tpu_custom_call.1} parent=1 // loop_footer
      %s28 = sadd.s32 1, %s24
    $region7: #{tpu_custom_call.1} parent=1 // loop_footer_branch
      %23 = sbr.rel target = $region3
    $region8: #{tpu_custom_call.1} parent=1 // loop_exit
      _
    %1482 = vsyncpa [#allocation3], 1
    %s1483 = scalar_lea.sflag [#allocation3], 1
    %1484 = vsyncpa %s1483, 1
    %1485 = vsyncpa [#allocation6], 1
    %1486 = vsyncpa [#allocation9], 1
    %1487 = vsyncpa [#allocation4], 1
    %s1488 = scalar_lea.sflag [#allocation4], 1
    %1489 = vsyncpa %s1488, 1

</llo_original>
